<compile_context>
chip_gen: v5e
topology: v5e:2x2
jax: 0.10.0
libtpu: 0.0.40
codegen_flags: <defaults>
</compile_context>

<pallas_src>
import functools

import jax
import jax.numpy as jnp
from jax.experimental import pallas as pl
from jax.experimental.pallas import tpu as pltpu


# --------------------------------------------------------------------------- #
# Kernel
# --------------------------------------------------------------------------- #
def _centernet_head_kernel(x_ref, wT_ref, bias_ref, out_ref, *, H, W, nc,
                           use_bf16):
    C = x_ref.shape[1]
    Lp = x_ref.shape[2]                 # chunk * H * W (lane-packed images)
    nout = out_ref.shape[1]
    xf = x_ref[0]                       # (C, Lp) f32, channel-major

    # ---- per-lane boundary masks, hoisted out of the tap loop ---------------
    lane = jax.lax.broadcasted_iota(jnp.int32, (1, Lp), 1)
    if (W & (W - 1)) == 0 and (H & (H - 1)) == 0:     # power-of-two fast path
        w_idx = lane & (W - 1)
        h_idx = (lane >> (W.bit_length() - 1)) & (H - 1)
    else:
        w_idx = lane % W
        h_idx = (lane // W) % H
    m_w_lo, m_w_hi = w_idx > 0, w_idx < W - 1
    m_h_lo, m_h_hi = h_idx > 0, h_idx < H - 1
    masks = {
        (-1, -1): jnp.logical_and(m_h_lo, m_w_lo),
        (-1, 0): m_h_lo,
        (-1, 1): jnp.logical_and(m_h_lo, m_w_hi),
        (0, -1): m_w_lo,
        (0, 0): None,
        (0, 1): m_w_hi,
        (1, -1): jnp.logical_and(m_h_hi, m_w_lo),
        (1, 0): m_h_hi,
        (1, 1): jnp.logical_and(m_h_hi, m_w_hi),
    }

    mm_dtype = jnp.bfloat16 if use_bf16 else jnp.float32
    acc = jnp.zeros((nout, Lp), jnp.float32)

    # 3x3 depthwise folded into the 1x1: 9 accumulating MXU matmuls, one per
    # tap.  Masks zero any roll wrap-around (including across packed images).
    tap = 0
    for dh in (-1, 0, 1):
        for dw in (-1, 0, 1):
            s = dh * W + dw                            # read offset in flat H*W
            shifted = xf if s == 0 else pltpu.roll(xf, shift=(-s) % Lp, axis=1)
            m = masks[(dh, dw)]
            if m is not None:
                shifted = jnp.where(m, shifted, 0.0)
            acc = acc + jnp.dot(wT_ref[tap], shifted.astype(mm_dtype),
                                preferred_element_type=jnp.float32)
            tap += 1

    out = acc + bias_ref[...]                          # (nout, 1) lane-broadcast

    # sigmoid on the cls rows only; single lane-dense (nout, Lp) store.
    e = jnp.exp(-out)                                  # EUP
    if use_bf16:
        sig = pl.reciprocal(1.0 + e, approx=True)      # EUP, keeps divide off VALU
    else:
        sig = 1.0 / (1.0 + e)                          # exact path for strict check
    row = jax.lax.broadcasted_iota(jnp.int32, (nout, 1), 0)
    out_ref[0] = jnp.where(row < nc, sig, out).astype(out_ref.dtype)


# --------------------------------------------------------------------------- #
# Host-side parameter folding (eval BN + depthwise + head fusion) — call ONCE
# --------------------------------------------------------------------------- #
def fold_params(raw_params, *, eps=1e-5, use_bf16=True):
    """raw (module-style) params -> kernel params.

    Per head raw params: (w_dw (C,3,3), b_dw (C,), gamma, beta, mean, var,
                          w_pw (nout,C), b_pw (nout,))
    Returns {"wT": (9, nc+4, C) [bf16|f32], "bias": (nc+4, 1) f32}.
    """
    cls_p, wh_p = raw_params

    def fold_head(p):
        w_dw, b_dw, gamma, beta, mean, var, w_pw, b_pw = p
        C = w_dw.shape[0]
        scale = gamma / jnp.sqrt(var + eps)                     # (C,)
        dwk = (w_dw * scale[:, None, None]).reshape(C, 9)       # tap = kh*3+kw
        shift = (b_dw - mean) * scale + beta                    # (C,)
        b_fused = b_pw + w_pw @ shift                           # (nout,)
        # W'[o, tap, c] = w_pw[o, c] * dwk[c, tap]   (folded in f32)
        w_fold = w_pw[:, None, :] * dwk.T[None, :, :]           # (nout, 9, C)
        return w_fold.astype(jnp.float32), b_fused.astype(jnp.float32)

    w_cls, b_cls = fold_head(cls_p)                             # (nc, 9, C)
    w_wh, b_wh = fold_head(wh_p)                                # (4, 9, C)
    w_all = jnp.concatenate([w_cls, w_wh], axis=0)              # (nout, 9, C)
    wT = jnp.transpose(w_all, (1, 0, 2))                        # (9, nout, C)
    bias = jnp.concatenate([b_cls, b_wh]).reshape(-1, 1)        # (nout, 1)
    mm_dtype = jnp.bfloat16 if use_bf16 else jnp.float32
    # cast the *product* once (avoids double rounding of small dwk*pw values)
    return {"wT": wT.astype(mm_dtype), "bias": bias}


def _default_num_chunks(n_images):
    """>=2-way parallel grid only on v7x (2 TensorCores); single step otherwise."""
    try:
        kind = jax.devices()[0].device_kind.lower()
    except Exception:
        return 1
    two_core = ("v7" in kind) or ("tpu7" in kind)
    if two_core and n_images >= 2 and n_images % 2 == 0:
        return 2
    return 1


# --------------------------------------------------------------------------- #
# Public wrapper
# --------------------------------------------------------------------------- #
def centernet_head(x_nchw, folded, *, num_chunks=None):
    """x_nchw: (N, C, H, W) float32.  Returns (cls, wh) in NCHW, like PyTorch."""
    wT, bias = folded["wT"], folded["bias"]
    N, C, H, W = x_nchw.shape
    L = H * W
    nout = wT.shape[1]
    nc = nout - 4

    if num_chunks is None:
        num_chunks = _default_num_chunks(N)
    if num_chunks < 1 or N % num_chunks != 0:
        num_chunks = 1
    chunk = N // num_chunks
    Lp = chunk * L

    # Lane-pack `chunk` images per grid step, channel-major:
    # x_packed[g, c, m*L + l] = x[g*chunk + m, c, l]
    x_packed = (x_nchw.reshape(num_chunks, chunk, C, L)
                .transpose(0, 2, 1, 3)
                .reshape(num_chunks, C, Lp))

    use_bf16 = (wT.dtype == jnp.bfloat16)
    kernel = functools.partial(_centernet_head_kernel,
                               H=H, W=W, nc=nc, use_bf16=use_bf16)

    out_packed = pl.pallas_call(
        kernel,
        out_shape=jax.ShapeDtypeStruct((num_chunks, nout, Lp), x_nchw.dtype),
        grid_spec=pltpu.PrefetchScalarGridSpec(
            num_scalar_prefetch=0,
            grid=(num_chunks,),
            in_specs=[
                pl.BlockSpec((1, C, Lp), lambda g: (g, 0, 0)),        # images
                pl.BlockSpec((9, nout, C), lambda g: (0, 0, 0)),      # folded W'
                pl.BlockSpec((nout, 1), lambda g: (0, 0)),            # fused bias
            ],
            out_specs=pl.BlockSpec((1, nout, Lp), lambda g: (g, 0, 0)),
        ),
        compiler_params=pltpu.CompilerParams(
            dimension_semantics=("parallel",),
            vmem_limit_bytes=32 * 1024 * 1024),
    )(x_packed, wT, bias)

    # un-pack lanes (layout plumbing only) and split heads with free slices
    out = (out_packed.reshape(num_chunks, nout, chunk, L)
           .transpose(0, 2, 1, 3)
           .reshape(N, nout, H, W))
    return out[:, :nc], out[:, nc:]


# --------------------------------------------------------------------------- #
# Synthetic module-style parameters + plain-JAX reference
# --------------------------------------------------------------------------- #
def init_raw_params(key, c_in, nc):
    ks = jax.random.split(key, 6)

    def head_params(k_w, k_b, k_pw, n_out, pw_bias):
        w_dw = 0.1 * jax.random.normal(k_w, (c_in, 3, 3), jnp.float32)
        b_dw = 0.1 * jax.random.normal(k_b, (c_in,), jnp.float32)
        gamma = jnp.ones((c_in,), jnp.float32)      # fresh BatchNorm (eval mode)
        beta = jnp.zeros((c_in,), jnp.float32)
        mean = jnp.zeros((c_in,), jnp.float32)
        var = jnp.ones((c_in,), jnp.float32)
        w_pw = 0.01 * jax.random.normal(k_pw, (n_out, c_in), jnp.float32)
        b_pw = jnp.full((n_out,), pw_bias, jnp.float32)
        return (w_dw, b_dw, gamma, beta, mean, var, w_pw, b_pw)

    cls_p = head_params(ks[0], ks[1], ks[2], nc, -2.19)   # normal_init bias=-2.19
    wh_p = head_params(ks[3], ks[4], ks[5], 4, 0.0)       # normal_init bias=0
    return (cls_p, wh_p)


def reference(x_nchw, raw_params, eps=1e-5):
    """Plain-JAX, unfused reference matching the PyTorch module's math."""
    N, C, H, W = x_nchw.shape
    xpad = jnp.pad(x_nchw, ((0, 0), (0, 0), (1, 1), (1, 1)))

    def head(p, apply_sigmoid):
        w_dw, b_dw, gamma, beta, mean, var, w_pw, b_pw = p
        acc = jnp.zeros((N, C, H, W), jnp.float32)
        for kh in range(3):
            for kw in range(3):
                acc = acc + (xpad[:, :, kh:kh + H, kw:kw + W]
                             * w_dw[:, kh, kw][None, :, None, None])
        y = acc + b_dw[None, :, None, None]
        scale = gamma / jnp.sqrt(var + eps)
        y = (y - mean[None, :, None, None]) * scale[None, :, None, None] \
            + beta[None, :, None, None]
        out = jnp.einsum('nchw,oc->nohw', y, w_pw,
                         precision=jax.lax.Precision.HIGHEST) \
            + b_pw[None, :, None, None]
        return jax.nn.sigmoid(out) if apply_sigmoid else out

    return head(raw_params[0], True), head(raw_params[1], False)


# --------------------------------------------------------------------------- #
if __name__ == "__main__":
    key = jax.random.PRNGKey(0)
    N, C_in, H, W = 2, 32, 16, 16      # head_dims[0] = 32
    nc = 8                             # number of classes

    kx, kp = jax.random.split(key)
    x = jax.random.normal(kx, (N, C_in, H, W), jnp.float32)
    raw = init_raw_params(kp, C_in, nc)

    cls_ref, wh_ref = reference(x, raw)

    # Parameters folded ONCE, outside the hot path; the head call is jit-able.
    folded_f32 = fold_params(raw, use_bf16=False)
    folded_bf16 = fold_params(raw, use_bf16=True)
    head = jax.jit(centernet_head)

    # Strict f32 check (runs on every TPU generation).
    cls_out, wh_out = jax.block_until_ready(head(x, folded_f32))
    assert cls_out.shape == (N, nc, H, W) and wh_out.shape == (N, 4, H, W)
    assert jnp.allclose(cls_out, cls_ref, atol=1e-4, rtol=1e-4)
    assert jnp.allclose(wh_out, wh_ref, atol=1e-4, rtol=1e-4)

    # Exercise the multi-chunk (v7x-style 2-way parallel grid) path as well.
    head_2chunk = jax.jit(functools.partial(centernet_head, num_chunks=2))
    cls2, wh2 = jax.block_until_ready(head_2chunk(x, folded_f32))
    assert jnp.allclose(cls2, cls_ref, atol=1e-4, rtol=1e-4)
    assert jnp.allclose(wh2, wh_ref, atol=1e-4, rtol=1e-4)

    # bf16-fed MXU fast path (preferred on v5e/v6e/v7x), looser tolerance.
    cls_b, wh_b = jax.block_until_ready(head(x, folded_bf16))
    assert jnp.allclose(cls_b, cls_ref, atol=3e-3, rtol=2e-2)
    assert jnp.allclose(wh_b, wh_ref, atol=3e-3, rtol=2e-2)

    print("KERNEL_OK")
</pallas_src>

<mosaic_0001>
module attributes {stable_mosaic.version = 11 : i64} {
  func.func @_centernet_head_kernel(%arg0: i32, %arg1: memref<1x32x512xf32, #tpu.memory_space<vmem>>, %arg2: memref<9x12x32xf32, #tpu.memory_space<vmem>>, %arg3: memref<12x1xf32, #tpu.memory_space<vmem>>, %arg4: memref<1x12x512xf32, #tpu.memory_space<vmem>>) attributes {dimension_semantics = [#tpu.dimension_semantics<parallel>], iteration_bounds = array<i64: 1>, scalar_prefetch = 0 : i64, scratch_operands = 0 : i64, tpu.core_type = #tpu.core_type<tc>, window_params = [{transform_indices = @transform_0, window_bounds = array<i64: 1, 32, 512>}, {pipeline_mode = #tpu.pipeline_mode<synchronous>, transform_indices = @transform_1, window_bounds = array<i64: 9, 12, 32>}, {pipeline_mode = #tpu.pipeline_mode<synchronous>, transform_indices = @transform_2, window_bounds = array<i64: 12, 1>}, {transform_indices = @transform_3, window_bounds = array<i64: 1, 12, 512>}]} {
    %c0 = arith.constant 0 : index
    %c0_0 = arith.constant 0 : index
    %c0_1 = arith.constant 0 : index
    %0 = vector.load %arg1[%c0, %c0_0, %c0_1] : memref<1x32x512xf32, #tpu.memory_space<vmem>>, vector<1x32x512xf32>
    %1 = vector.shape_cast %0 : vector<1x32x512xf32> to vector<32x512xf32>
    %2 = tpu.iota {dimensions = array<i32: 1>} : vector<1x512xi32>
    %c15_i32 = arith.constant 15 : i32
    %3 = vector.broadcast %c15_i32 : i32 to vector<1x512xi32>
    %4 = arith.andi %2, %3 : vector<1x512xi32>
    %c4_i32 = arith.constant 4 : i32
    %5 = vector.broadcast %c4_i32 : i32 to vector<1x512xi32>
    %6 = arith.shrsi %2, %5 : vector<1x512xi32>
    %c15_i32_2 = arith.constant 15 : i32
    %7 = vector.broadcast %c15_i32_2 : i32 to vector<1x512xi32>
    %8 = arith.andi %6, %7 : vector<1x512xi32>
    %c0_i32 = arith.constant 0 : i32
    %9 = vector.broadcast %c0_i32 : i32 to vector<1x512xi32>
    %10 = arith.cmpi sgt, %4, %9 : vector<1x512xi32>
    %c15_i32_3 = arith.constant 15 : i32
    %11 = vector.broadcast %c15_i32_3 : i32 to vector<1x512xi32>
    %12 = arith.cmpi slt, %4, %11 : vector<1x512xi32>
    %c0_i32_4 = arith.constant 0 : i32
    %13 = vector.broadcast %c0_i32_4 : i32 to vector<1x512xi32>
    %14 = arith.cmpi sgt, %8, %13 : vector<1x512xi32>
    %c15_i32_5 = arith.constant 15 : i32
    %15 = vector.broadcast %c15_i32_5 : i32 to vector<1x512xi32>
    %16 = arith.cmpi slt, %8, %15 : vector<1x512xi32>
    %17 = arith.andi %14, %10 : vector<1x512xi1>
    %18 = arith.andi %14, %12 : vector<1x512xi1>
    %19 = arith.andi %16, %10 : vector<1x512xi1>
    %20 = arith.andi %16, %12 : vector<1x512xi1>
    %cst = arith.constant 0.000000e+00 : f32
    %21 = vector.broadcast %cst : f32 to vector<12x512xf32>
    %c17_i32 = arith.constant 17 : i32
    %22 = tpu.dynamic_rotate %1 by %c17_i32 dim 1 : vector<32x512xf32>, i32 -> vector<32x512xf32>
    %cst_6 = arith.constant 0.000000e+00 : f32
    %23 = vector.shape_cast %17 : vector<1x512xi1> to vector<1x512xi1>
    %24 = vector.broadcast %23 : vector<1x512xi1> to vector<32x512xi1>
    %25 = vector.broadcast %cst_6 : f32 to vector<32x512xf32>
    %26 = arith.select %24, %22, %25 : vector<32x512xi1>, vector<32x512xf32>
    %c0_7 = arith.constant 0 : index
    %c0_8 = arith.constant 0 : index
    %c0_9 = arith.constant 0 : index
    %27 = vector.load %arg2[%c0_7, %c0_8, %c0_9] : memref<9x12x32xf32, #tpu.memory_space<vmem>>, vector<1x12x32xf32>
    %28 = vector.shape_cast %27 : vector<1x12x32xf32> to vector<12x32xf32>
    %cst_10 = arith.constant dense<0.000000e+00> : vector<12x512xf32>
    %29 = tpu.matmul %28, %26, %cst_10 {dimension_numbers = #tpu.dot_dimension_numbers<[1], [0], [0], [1], [0, 0, 1, 1], [], []>} : vector<12x32xf32>, vector<32x512xf32>, vector<12x512xf32> -> vector<12x512xf32>
    %30 = arith.addf %21, %29 : vector<12x512xf32>
    %c16_i32 = arith.constant 16 : i32
    %31 = tpu.dynamic_rotate %1 by %c16_i32 dim 1 : vector<32x512xf32>, i32 -> vector<32x512xf32>
    %cst_11 = arith.constant 0.000000e+00 : f32
    %32 = vector.shape_cast %14 : vector<1x512xi1> to vector<1x512xi1>
    %33 = vector.broadcast %32 : vector<1x512xi1> to vector<32x512xi1>
    %34 = vector.broadcast %cst_11 : f32 to vector<32x512xf32>
    %35 = arith.select %33, %31, %34 : vector<32x512xi1>, vector<32x512xf32>
    %c1 = arith.constant 1 : index
    %c0_12 = arith.constant 0 : index
    %c0_13 = arith.constant 0 : index
    %36 = vector.load %arg2[%c1, %c0_12, %c0_13] : memref<9x12x32xf32, #tpu.memory_space<vmem>>, vector<1x12x32xf32>
    %37 = vector.shape_cast %36 : vector<1x12x32xf32> to vector<12x32xf32>
    %cst_14 = arith.constant dense<0.000000e+00> : vector<12x512xf32>
    %38 = tpu.matmul %37, %35, %cst_14 {dimension_numbers = #tpu.dot_dimension_numbers<[1], [0], [0], [1], [0, 0, 1, 1], [], []>} : vector<12x32xf32>, vector<32x512xf32>, vector<12x512xf32> -> vector<12x512xf32>
    %39 = arith.addf %30, %38 : vector<12x512xf32>
    %c15_i32_15 = arith.constant 15 : i32
    %40 = tpu.dynamic_rotate %1 by %c15_i32_15 dim 1 : vector<32x512xf32>, i32 -> vector<32x512xf32>
    %cst_16 = arith.constant 0.000000e+00 : f32
    %41 = vector.shape_cast %18 : vector<1x512xi1> to vector<1x512xi1>
    %42 = vector.broadcast %41 : vector<1x512xi1> to vector<32x512xi1>
    %43 = vector.broadcast %cst_16 : f32 to vector<32x512xf32>
    %44 = arith.select %42, %40, %43 : vector<32x512xi1>, vector<32x512xf32>
    %c2 = arith.constant 2 : index
    %c0_17 = arith.constant 0 : index
    %c0_18 = arith.constant 0 : index
    %45 = vector.load %arg2[%c2, %c0_17, %c0_18] : memref<9x12x32xf32, #tpu.memory_space<vmem>>, vector<1x12x32xf32>
    %46 = vector.shape_cast %45 : vector<1x12x32xf32> to vector<12x32xf32>
    %cst_19 = arith.constant dense<0.000000e+00> : vector<12x512xf32>
    %47 = tpu.matmul %46, %44, %cst_19 {dimension_numbers = #tpu.dot_dimension_numbers<[1], [0], [0], [1], [0, 0, 1, 1], [], []>} : vector<12x32xf32>, vector<32x512xf32>, vector<12x512xf32> -> vector<12x512xf32>
    %48 = arith.addf %39, %47 : vector<12x512xf32>
    %c1_i32 = arith.constant 1 : i32
    %49 = tpu.dynamic_rotate %1 by %c1_i32 dim 1 : vector<32x512xf32>, i32 -> vector<32x512xf32>
    %cst_20 = arith.constant 0.000000e+00 : f32
    %50 = vector.shape_cast %10 : vector<1x512xi1> to vector<1x512xi1>
    %51 = vector.broadcast %50 : vector<1x512xi1> to vector<32x512xi1>
    %52 = vector.broadcast %cst_20 : f32 to vector<32x512xf32>
    %53 = arith.select %51, %49, %52 : vector<32x512xi1>, vector<32x512xf32>
    %c3 = arith.constant 3 : index
    %c0_21 = arith.constant 0 : index
    %c0_22 = arith.constant 0 : index
    %54 = vector.load %arg2[%c3, %c0_21, %c0_22] : memref<9x12x32xf32, #tpu.memory_space<vmem>>, vector<1x12x32xf32>
    %55 = vector.shape_cast %54 : vector<1x12x32xf32> to vector<12x32xf32>
    %cst_23 = arith.constant dense<0.000000e+00> : vector<12x512xf32>
    %56 = tpu.matmul %55, %53, %cst_23 {dimension_numbers = #tpu.dot_dimension_numbers<[1], [0], [0], [1], [0, 0, 1, 1], [], []>} : vector<12x32xf32>, vector<32x512xf32>, vector<12x512xf32> -> vector<12x512xf32>
    %57 = arith.addf %48, %56 : vector<12x512xf32>
    %c4 = arith.constant 4 : index
    %c0_24 = arith.constant 0 : index
    %c0_25 = arith.constant 0 : index
    %58 = vector.load %arg2[%c4, %c0_24, %c0_25] : memref<9x12x32xf32, #tpu.memory_space<vmem>>, vector<1x12x32xf32>
    %59 = vector.shape_cast %58 : vector<1x12x32xf32> to vector<12x32xf32>
    %cst_26 = arith.constant dense<0.000000e+00> : vector<12x512xf32>
    %60 = tpu.matmul %59, %1, %cst_26 {dimension_numbers = #tpu.dot_dimension_numbers<[1], [0], [0], [1], [0, 0, 1, 1], [], []>} : vector<12x32xf32>, vector<32x512xf32>, vector<12x512xf32> -> vector<12x512xf32>
    %61 = arith.addf %57, %60 : vector<12x512xf32>
    %c511_i32 = arith.constant 511 : i32
    %62 = tpu.dynamic_rotate %1 by %c511_i32 dim 1 : vector<32x512xf32>, i32 -> vector<32x512xf32>
    %cst_27 = arith.constant 0.000000e+00 : f32
    %63 = vector.shape_cast %12 : vector<1x512xi1> to vector<1x512xi1>
    %64 = vector.broadcast %63 : vector<1x512xi1> to vector<32x512xi1>
    %65 = vector.broadcast %cst_27 : f32 to vector<32x512xf32>
    %66 = arith.select %64, %62, %65 : vector<32x512xi1>, vector<32x512xf32>
    %c5 = arith.constant 5 : index
    %c0_28 = arith.constant 0 : index
    %c0_29 = arith.constant 0 : index
    %67 = vector.load %arg2[%c5, %c0_28, %c0_29] : memref<9x12x32xf32, #tpu.memory_space<vmem>>, vector<1x12x32xf32>
    %68 = vector.shape_cast %67 : vector<1x12x32xf32> to vector<12x32xf32>
    %cst_30 = arith.constant dense<0.000000e+00> : vector<12x512xf32>
    %69 = tpu.matmul %68, %66, %cst_30 {dimension_numbers = #tpu.dot_dimension_numbers<[1], [0], [0], [1], [0, 0, 1, 1], [], []>} : vector<12x32xf32>, vector<32x512xf32>, vector<12x512xf32> -> vector<12x512xf32>
    %70 = arith.addf %61, %69 : vector<12x512xf32>
    %c497_i32 = arith.constant 497 : i32
    %71 = tpu.dynamic_rotate %1 by %c497_i32 dim 1 : vector<32x512xf32>, i32 -> vector<32x512xf32>
    %cst_31 = arith.constant 0.000000e+00 : f32
    %72 = vector.shape_cast %19 : vector<1x512xi1> to vector<1x512xi1>
    %73 = vector.broadcast %72 : vector<1x512xi1> to vector<32x512xi1>
    %74 = vector.broadcast %cst_31 : f32 to vector<32x512xf32>
    %75 = arith.select %73, %71, %74 : vector<32x512xi1>, vector<32x512xf32>
    %c6 = arith.constant 6 : index
    %c0_32 = arith.constant 0 : index
    %c0_33 = arith.constant 0 : index
    %76 = vector.load %arg2[%c6, %c0_32, %c0_33] : memref<9x12x32xf32, #tpu.memory_space<vmem>>, vector<1x12x32xf32>
    %77 = vector.shape_cast %76 : vector<1x12x32xf32> to vector<12x32xf32>
    %cst_34 = arith.constant dense<0.000000e+00> : vector<12x512xf32>
    %78 = tpu.matmul %77, %75, %cst_34 {dimension_numbers = #tpu.dot_dimension_numbers<[1], [0], [0], [1], [0, 0, 1, 1], [], []>} : vector<12x32xf32>, vector<32x512xf32>, vector<12x512xf32> -> vector<12x512xf32>
    %79 = arith.addf %70, %78 : vector<12x512xf32>
    %c496_i32 = arith.constant 496 : i32
    %80 = tpu.dynamic_rotate %1 by %c496_i32 dim 1 : vector<32x512xf32>, i32 -> vector<32x512xf32>
    %cst_35 = arith.constant 0.000000e+00 : f32
    %81 = vector.shape_cast %16 : vector<1x512xi1> to vector<1x512xi1>
    %82 = vector.broadcast %81 : vector<1x512xi1> to vector<32x512xi1>
    %83 = vector.broadcast %cst_35 : f32 to vector<32x512xf32>
    %84 = arith.select %82, %80, %83 : vector<32x512xi1>, vector<32x512xf32>
    %c7 = arith.constant 7 : index
    %c0_36 = arith.constant 0 : index
    %c0_37 = arith.constant 0 : index
    %85 = vector.load %arg2[%c7, %c0_36, %c0_37] : memref<9x12x32xf32, #tpu.memory_space<vmem>>, vector<1x12x32xf32>
    %86 = vector.shape_cast %85 : vector<1x12x32xf32> to vector<12x32xf32>
    %cst_38 = arith.constant dense<0.000000e+00> : vector<12x512xf32>
    %87 = tpu.matmul %86, %84, %cst_38 {dimension_numbers = #tpu.dot_dimension_numbers<[1], [0], [0], [1], [0, 0, 1, 1], [], []>} : vector<12x32xf32>, vector<32x512xf32>, vector<12x512xf32> -> vector<12x512xf32>
    %88 = arith.addf %79, %87 : vector<12x512xf32>
    %c495_i32 = arith.constant 495 : i32
    %89 = tpu.dynamic_rotate %1 by %c495_i32 dim 1 : vector<32x512xf32>, i32 -> vector<32x512xf32>
    %cst_39 = arith.constant 0.000000e+00 : f32
    %90 = vector.shape_cast %20 : vector<1x512xi1> to vector<1x512xi1>
    %91 = vector.broadcast %90 : vector<1x512xi1> to vector<32x512xi1>
    %92 = vector.broadcast %cst_39 : f32 to vector<32x512xf32>
    %93 = arith.select %91, %89, %92 : vector<32x512xi1>, vector<32x512xf32>
    %c8 = arith.constant 8 : index
    %c0_40 = arith.constant 0 : index
    %c0_41 = arith.constant 0 : index
    %94 = vector.load %arg2[%c8, %c0_40, %c0_41] : memref<9x12x32xf32, #tpu.memory_space<vmem>>, vector<1x12x32xf32>
    %95 = vector.shape_cast %94 : vector<1x12x32xf32> to vector<12x32xf32>
    %cst_42 = arith.constant dense<0.000000e+00> : vector<12x512xf32>
    %96 = tpu.matmul %95, %93, %cst_42 {dimension_numbers = #tpu.dot_dimension_numbers<[1], [0], [0], [1], [0, 0, 1, 1], [], []>} : vector<12x32xf32>, vector<32x512xf32>, vector<12x512xf32> -> vector<12x512xf32>
    %97 = arith.addf %88, %96 : vector<12x512xf32>
    %c0_43 = arith.constant 0 : index
    %c0_44 = arith.constant 0 : index
    %98 = vector.load %arg3[%c0_43, %c0_44] : memref<12x1xf32, #tpu.memory_space<vmem>>, vector<12x1xf32>
    %99 = vector.broadcast %98 : vector<12x1xf32> to vector<12x512xf32>
    %100 = arith.addf %97, %99 : vector<12x512xf32>
    %cst_45 = arith.constant 0.000000e+00 : f32
    %101 = vector.broadcast %cst_45 : f32 to vector<12x512xf32>
    %102 = arith.subf %101, %100 : vector<12x512xf32>
    %103 = math.exp %102 : vector<12x512xf32>
    %cst_46 = arith.constant 1.000000e+00 : f32
    %104 = vector.broadcast %cst_46 : f32 to vector<12x512xf32>
    %105 = arith.addf %104, %103 : vector<12x512xf32>
    %cst_47 = arith.constant 1.000000e+00 : f32
    %106 = vector.broadcast %cst_47 : f32 to vector<12x512xf32>
    %107 = arith.divf %106, %105 : vector<12x512xf32>
    %108 = tpu.iota {dimensions = array<i32: 0>} : vector<12x1xi32>
    %c8_i32 = arith.constant 8 : i32
    %109 = vector.broadcast %c8_i32 : i32 to vector<12x1xi32>
    %110 = arith.cmpi slt, %108, %109 : vector<12x1xi32>
    %111 = vector.shape_cast %110 : vector<12x1xi1> to vector<12x1xi1>
    %112 = vector.broadcast %111 : vector<12x1xi1> to vector<12x512xi1>
    %113 = arith.select %112, %107, %100 : vector<12x512xi1>, vector<12x512xf32>
    %c0_48 = arith.constant 0 : index
    %c0_49 = arith.constant 0 : index
    %c0_50 = arith.constant 0 : index
    %114 = vector.load %arg4[%c0_48, %c0_49, %c0_50] : memref<1x12x512xf32, #tpu.memory_space<vmem>>, vector<1x12x512xf32>
    %115 = vector.shape_cast %114 : vector<1x12x512xf32> to vector<12x512xf32>
    %116 = vector.shape_cast %113 : vector<12x512xf32> to vector<1x12x512xf32>
    tpu.vector_store %arg4[%c0_48, %c0_49, %c0_50], %116 {strides = array<i32>} : memref<1x12x512xf32, #tpu.memory_space<vmem>>, vector<1x12x512xf32>,
    return
  }
  func.func @transform_0(%arg0: i32) -> (i32, i32, i32) {
    %c0_i32 = arith.constant 0 : i32
    %c0_i32_0 = arith.constant 0 : i32
    %c0_i32_1 = arith.constant 0 : i32
    return %arg0, %c0_i32, %c0_i32_0 : i32, i32, i32
  }
  func.func @transform_1(%arg0: i32) -> (i32, i32, i32) {
    %c0_i32 = arith.constant 0 : i32
    %c0_i32_0 = arith.constant 0 : i32
    %c0_i32_1 = arith.constant 0 : i32
    %c0_i32_2 = arith.constant 0 : i32
    return %c0_i32, %c0_i32_0, %c0_i32_1 : i32, i32, i32
  }
  func.func @transform_2(%arg0: i32) -> (i32, i32) {
    %c0_i32 = arith.constant 0 : i32
    %c0_i32_0 = arith.constant 0 : i32
    %c0_i32_1 = arith.constant 0 : i32
    return %c0_i32, %c0_i32_0 : i32, i32
  }
  func.func @transform_3(%arg0: i32) -> (i32, i32, i32) {
    %c0_i32 = arith.constant 0 : i32
    %c0_i32_0 = arith.constant 0 : i32
    %c0_i32_1 = arith.constant 0 : i32
    return %arg0, %c0_i32, %c0_i32_0 : i32, i32, i32
  }
}

</mosaic_0001>

<llo_original>
// kernel: centernet_head.1
$region0: #{centernet_head.1}
  #allocation0 [shape = 'u32[]', space=smem, size = 0x4, offset = 0x4, fixed_abs, tag = 'smem constant byte address 0x4 - core index']
  #allocation1 [shape = 'u32[72,128]{1,0:T(1,128)}', space=vmem, size = 0x9000, scoped, tag = 'internal scratch']
  %s0 = inlined_call_operand.vmem [shape: f32[1,32,512], index: 0, kind: input, shape index: {}]
  %s1 = inlined_call_operand.vmem [shape: f32[9,12,32], index: 1, kind: input, shape index: {}]
  %s2 = inlined_call_operand.vmem [shape: f32[12,1], index: 2, kind: input, shape index: {}]
  %s3 = inlined_call_operand.vmem [shape: f32[1,12,512], index: 3, kind: output, shape index: {}]
  %s4 = sld [smem:[#allocation0]]
  $region22: #{centernet_head.1} parent=0
    _
  %s6 = ssub.s32 1, %s4
  %s7 = scalar_select 0, %s6, %s4
  // Predicated region
  $region2: #{centernet_head.1} parent=0 // pred_check
    _
  $region3: #{centernet_head.1} parent=0 // pred_check_branch
    %9 = sbr.rel (0) target = $region5
  $region4: #{centernet_head.1} parent=0 // pred_region
    _
  $region5: #{centernet_head.1} parent=0 // pred_fallthru
    _
  // Predicated region
  $region6: #{centernet_head.1} parent=0 // pred_check
    _
  $region7: #{centernet_head.1} parent=0 // pred_check_branch
    %11 = sbr.rel (0) target = $region9
  $region8: #{centernet_head.1} parent=0 // pred_region
    _
  $region9: #{centernet_head.1} parent=0 // pred_fallthru
    _
  // Predicated region
  $region10: #{centernet_head.1} parent=0 // pred_check
    _
  $region11: #{centernet_head.1} parent=0 // pred_check_branch
    %13 = sbr.rel (0) target = $region13
  $region12: #{centernet_head.1} parent=0 // pred_region
    _
  $region13: #{centernet_head.1} parent=0 // pred_fallthru
    _
  %v14 = vld [vmem:[%s0] sm:$0xff]
  %v15 = vld [vmem:[%s0 + $0x8] sm:$0xff]
  %v16 = vld [vmem:[%s0 + $0x10] sm:$0xff]
  %v17 = vld [vmem:[%s0 + $0x18] sm:$0xff]
  %v18 = vld [vmem:[%s0 + $0x20] sm:$0xff]
  %v19 = vld [vmem:[%s0 + $0x28] sm:$0xff]
  %v20 = vld [vmem:[%s0 + $0x30] sm:$0xff]
  %v21 = vld [vmem:[%s0 + $0x38] sm:$0xff]
  %v22 = vld [vmem:[%s0 + $0x40] sm:$0xff]
  %v23 = vld [vmem:[%s0 + $0x48] sm:$0xff]
  %v24 = vld [vmem:[%s0 + $0x50] sm:$0xff]
  %v25 = vld [vmem:[%s0 + $0x58] sm:$0xff]
  %v26 = vld [vmem:[%s0 + $0x60] sm:$0xff]
  %v27 = vld [vmem:[%s0 + $0x68] sm:$0xff]
  %v28 = vld [vmem:[%s0 + $0x70] sm:$0xff]
  %v29 = vld [vmem:[%s0 + $0x78] sm:$0xff]
  %v30 = vlaneseq
  %v31 = vand.u32 %v30, 127
  %v32 = vadd.s32 %v31, 128
  %v33 = vadd.s32 %v31, 256
  %v34 = vadd.s32 %v31, 384
  %v35 = vand.u32 %v31, 15
  %v36 = vand.u32 %v32, 15
  %v37 = vand.u32 %v33, 15
  %v38 = vand.u32 %v34, 15
  %v39 = vshra.s32 %v31, 4
  %v40 = vshra.s32 %v32, 4
  %v41 = vshra.s32 %v33, 4
  %v42 = vshra.s32 %v34, 4
  %v43 = vand.u32 %v39, 15
  %v44 = vand.u32 %v40, 15
  %v45 = vand.u32 %v41, 15
  %v46 = vand.u32 %v42, 15
  %vm47 = vcmp.gt.s32.totalorder %v35, 0
  %vm48 = vcmp.gt.s32.totalorder %v36, 0
  %vm49 = vcmp.gt.s32.totalorder %v37, 0
  %vm50 = vcmp.gt.s32.totalorder %v38, 0
  %vm51 = vcmp.lt.s32.totalorder %v35, 15
  %vm52 = vcmp.lt.s32.totalorder %v36, 15
  %vm53 = vcmp.lt.s32.totalorder %v37, 15
  %vm54 = vcmp.lt.s32.totalorder %v38, 15
  %vm55 = vcmp.gt.s32.totalorder %v43, 0
  %vm56 = vcmp.gt.s32.totalorder %v44, 0
  %vm57 = vcmp.gt.s32.totalorder %v45, 0
  %vm58 = vcmp.gt.s32.totalorder %v46, 0
  %vm59 = vcmp.lt.s32.totalorder %v43, 15
  %vm60 = vcmp.lt.s32.totalorder %v44, 15
  %vm61 = vcmp.lt.s32.totalorder %v45, 15
  %vm62 = vcmp.lt.s32.totalorder %v46, 15
  %vm63 = vmand %vm55, %vm47
  %vm64 = vmand %vm56, %vm48
  %vm65 = vmand %vm57, %vm49
  %vm66 = vmand %vm58, %vm50
  %vm67 = vmand %vm55, %vm51
  %vm68 = vmand %vm56, %vm52
  %vm69 = vmand %vm57, %vm53
  %vm70 = vmand %vm58, %vm54
  %vm71 = vmand %vm59, %vm47
  %vm72 = vmand %vm60, %vm48
  %vm73 = vmand %vm61, %vm49
  %vm74 = vmand %vm62, %vm50
  %vm75 = vmand %vm59, %vm51
  %vm76 = vmand %vm60, %vm52
  %vm77 = vmand %vm61, %vm53
  %vm78 = vmand %vm62, %vm54
  %79 = vrot.lane.b32.xlu0 %v14, 17
  %v80 = vpop.permute.xlu0 %79
  %81 = vrot.lane.b32.xlu0 %v18, 17
  %v82 = vpop.permute.xlu0 %81
  %83 = vrot.lane.b32.xlu0 %v22, 17
  %v84 = vpop.permute.xlu0 %83
  %85 = vrot.lane.b32.xlu0 %v26, 17
  %v86 = vpop.permute.xlu0 %85
  %87 = vrot.lane.b32.xlu0 %v15, 17
  %v88 = vpop.permute.xlu0 %87
  %89 = vrot.lane.b32.xlu0 %v19, 17
  %v90 = vpop.permute.xlu0 %89
  %91 = vrot.lane.b32.xlu0 %v23, 17
  %v92 = vpop.permute.xlu0 %91
  %93 = vrot.lane.b32.xlu0 %v27, 17
  %v94 = vpop.permute.xlu0 %93
  %95 = vrot.lane.b32.xlu0 %v16, 17
  %v96 = vpop.permute.xlu0 %95
  %97 = vrot.lane.b32.xlu0 %v20, 17
  %v98 = vpop.permute.xlu0 %97
  %99 = vrot.lane.b32.xlu0 %v24, 17
  %v100 = vpop.permute.xlu0 %99
  %101 = vrot.lane.b32.xlu0 %v28, 17
  %v102 = vpop.permute.xlu0 %101
  %103 = vrot.lane.b32.xlu0 %v17, 17
  %v104 = vpop.permute.xlu0 %103
  %105 = vrot.lane.b32.xlu0 %v21, 17
  %v106 = vpop.permute.xlu0 %105
  %107 = vrot.lane.b32.xlu0 %v25, 17
  %v108 = vpop.permute.xlu0 %107
  %109 = vrot.lane.b32.xlu0 %v29, 17
  %v110 = vpop.permute.xlu0 %109
  %vm111 = vcmp.lt.s32.totalorder %v31, 17
  %v112 = vsel %vm111, %v96, %v104
  %v113 = vsel %vm111, %v98, %v106
  %v114 = vsel %vm111, %v100, %v108
  %v115 = vsel %vm111, %v102, %v110
  %v116 = vsel %vm111, %v88, %v96
  %v117 = vsel %vm111, %v90, %v98
  %v118 = vsel %vm111, %v92, %v100
  %v119 = vsel %vm111, %v94, %v102
  %v120 = vsel %vm111, %v80, %v88
  %v121 = vsel %vm111, %v82, %v90
  %v122 = vsel %vm111, %v84, %v92
  %v123 = vsel %vm111, %v86, %v94
  %v124 = vsel %vm111, %v104, %v80
  %v125 = vsel %vm111, %v106, %v82
  %v126 = vsel %vm111, %v108, %v84
  %v127 = vsel %vm111, %v110, %v86
  %v128 = vsel %vm63, 1, 0
  %v129 = vsel %vm64, 1, 0
  %v130 = vsel %vm65, 1, 0
  %v131 = vsel %vm66, 1, 0
  %vm132 = vcmp.eq.s32.totalorder %v128, 1
  %vm133 = vcmp.eq.s32.totalorder %v129, 1
  %vm134 = vcmp.eq.s32.totalorder %v130, 1
  %vm135 = vcmp.eq.s32.totalorder %v131, 1
  %v136 = vsel %vm132, %v124, 0.0
  %v137 = vsel %vm133, %v120, 0.0
  %v138 = vsel %vm134, %v116, 0.0
  %v139 = vsel %vm135, %v112, 0.0
  %v140 = vsel %vm132, %v125, 0.0
  %v141 = vsel %vm133, %v121, 0.0
  %v142 = vsel %vm134, %v117, 0.0
  %v143 = vsel %vm135, %v113, 0.0
  %v144 = vsel %vm132, %v126, 0.0
  %v145 = vsel %vm133, %v122, 0.0
  %v146 = vsel %vm134, %v118, 0.0
  %v147 = vsel %vm135, %v114, 0.0
  %v148 = vsel %vm132, %v127, 0.0
  %v149 = vsel %vm133, %v123, 0.0
  %v150 = vsel %vm134, %v119, 0.0
  %v151 = vsel %vm135, %v115, 0.0
  %v152 = vld [vmem:[%s1] sm:$0xff]
  %v153 = vld [vmem:[%s1 + $0x8] sm:$0xf]
  %154 = vrot.lane.b32.xlu0 %v14, 16
  %v155 = vpop.permute.xlu0 %154
  %156 = vrot.lane.b32.xlu0 %v18, 16
  %v157 = vpop.permute.xlu0 %156
  %158 = vrot.lane.b32.xlu0 %v22, 16
  %v159 = vpop.permute.xlu0 %158
  %160 = vrot.lane.b32.xlu0 %v26, 16
  %v161 = vpop.permute.xlu0 %160
  %162 = vrot.lane.b32.xlu0 %v15, 16
  %v163 = vpop.permute.xlu0 %162
  %164 = vrot.lane.b32.xlu0 %v19, 16
  %v165 = vpop.permute.xlu0 %164
  %166 = vrot.lane.b32.xlu0 %v23, 16
  %v167 = vpop.permute.xlu0 %166
  %168 = vrot.lane.b32.xlu0 %v27, 16
  %v169 = vpop.permute.xlu0 %168
  %170 = vrot.lane.b32.xlu0 %v16, 16
  %v171 = vpop.permute.xlu0 %170
  %172 = vrot.lane.b32.xlu0 %v20, 16
  %v173 = vpop.permute.xlu0 %172
  %174 = vrot.lane.b32.xlu0 %v24, 16
  %v175 = vpop.permute.xlu0 %174
  %176 = vrot.lane.b32.xlu0 %v28, 16
  %v177 = vpop.permute.xlu0 %176
  %178 = vrot.lane.b32.xlu0 %v17, 16
  %v179 = vpop.permute.xlu0 %178
  %180 = vrot.lane.b32.xlu0 %v21, 16
  %v181 = vpop.permute.xlu0 %180
  %182 = vrot.lane.b32.xlu0 %v25, 16
  %v183 = vpop.permute.xlu0 %182
  %184 = vrot.lane.b32.xlu0 %v29, 16
  %v185 = vpop.permute.xlu0 %184
  %vm186 = vcmp.lt.s32.totalorder %v31, 16
  %v187 = vsel %vm186, %v171, %v179
  %v188 = vsel %vm186, %v173, %v181
  %v189 = vsel %vm186, %v175, %v183
  %v190 = vsel %vm186, %v177, %v185
  %v191 = vsel %vm186, %v163, %v171
  %v192 = vsel %vm186, %v165, %v173
  %v193 = vsel %vm186, %v167, %v175
  %v194 = vsel %vm186, %v169, %v177
  %v195 = vsel %vm186, %v155, %v163
  %v196 = vsel %vm186, %v157, %v165
  %v197 = vsel %vm186, %v159, %v167
  %v198 = vsel %vm186, %v161, %v169
  %v199 = vsel %vm186, %v179, %v155
  %v200 = vsel %vm186, %v181, %v157
  %v201 = vsel %vm186, %v183, %v159
  %v202 = vsel %vm186, %v185, %v161
  %v203 = vsel %vm55, 1, 0
  %v204 = vsel %vm56, 1, 0
  %v205 = vsel %vm57, 1, 0
  %v206 = vsel %vm58, 1, 0
  %vm207 = vcmp.eq.s32.totalorder %v203, 1
  %vm208 = vcmp.eq.s32.totalorder %v204, 1
  %vm209 = vcmp.eq.s32.totalorder %v205, 1
  %vm210 = vcmp.eq.s32.totalorder %v206, 1
  %v211 = vsel %vm207, %v199, 0.0
  %v212 = vsel %vm208, %v195, 0.0
  %v213 = vsel %vm209, %v191, 0.0
  %v214 = vsel %vm210, %v187, 0.0
  %v215 = vsel %vm207, %v200, 0.0
  %v216 = vsel %vm208, %v196, 0.0
  %v217 = vsel %vm209, %v192, 0.0
  %v218 = vsel %vm210, %v188, 0.0
  %v219 = vsel %vm207, %v201, 0.0
  %v220 = vsel %vm208, %v197, 0.0
  %v221 = vsel %vm209, %v193, 0.0
  %v222 = vsel %vm210, %v189, 0.0
  %v223 = vsel %vm207, %v202, 0.0
  %v224 = vsel %vm208, %v198, 0.0
  %v225 = vsel %vm209, %v194, 0.0
  %v226 = vsel %vm210, %v190, 0.0
  %s227 = scalar_lea.vmem %s1, 16
  %v228 = vld [vmem:[%s227] sm:$0xff]
  %v229 = vld [vmem:[%s227 + $0x8] sm:$0xf]
  %vm230 = vcmask 261120
  %v232 = vsel %vm230, %v228, 0
  %v235 = vsel %vm230, %v229, 0
  %237 = vmatpush.msra.mxu0 0.0
  %238 = vmatpush.msra.mxu0 0.0
  %239 = vmatpush.msra.mxu0 0.0
  %240 = vmatpush.msra.mxu0 0.0
  %241 = vmatpush.msra.mxu0 0.0
  %242 = vmatpush.msra.mxu0 0.0
  %243 = vmatpush.msra.mxu0 0.0
  %244 = vmatpush.msra.mxu0 0.0
  %245 = vmatpush.msra.mxu0 0.0
  %246 = vmatpush.msra.mxu0 0.0
  %247 = vmatpush.msra.mxu0 0.0
  %248 = vmatpush.msra.mxu0 0.0
  %249 = vmatpush.msra.mxu0 %v223
  %250 = vmatpush.msra.mxu0 %v219
  %251 = vmatpush.msra.mxu0 %v215
  %252 = vmatpush.msra.mxu0 %v211
  %253 = vmatmul.f32.gmra.mxu0 %v232
  %v254 = vpop.f32.mrf.mxu0
  %v255 = vadd.f32 0.0, %v254
  %256 = vmatmul.f32.gmra.mxu0 %v235
  %v257 = vpop.f32.mrf.mxu0
  %v258 = vadd.f32 0.0, %v257
  %259 = vdwg.mxu0
  %260 = vmatpush.msra.mxu0 0.0
  %261 = vmatpush.msra.mxu0 0.0
  %262 = vmatpush.msra.mxu0 0.0
  %263 = vmatpush.msra.mxu0 0.0
  %264 = vmatpush.msra.mxu0 0.0
  %265 = vmatpush.msra.mxu0 0.0
  %266 = vmatpush.msra.mxu0 0.0
  %267 = vmatpush.msra.mxu0 0.0
  %268 = vmatpush.msra.mxu0 0.0
  %269 = vmatpush.msra.mxu0 0.0
  %270 = vmatpush.msra.mxu0 0.0
  %271 = vmatpush.msra.mxu0 0.0
  %272 = vmatpush.msra.mxu0 %v224
  %273 = vmatpush.msra.mxu0 %v220
  %274 = vmatpush.msra.mxu0 %v216
  %275 = vmatpush.msra.mxu0 %v212
  %276 = vmatmul.f32.gmra.mxu0 %v232
  %v277 = vpop.f32.mrf.mxu0
  %v278 = vadd.f32 0.0, %v277
  %279 = vmatmul.f32.gmra.mxu0 %v235
  %v280 = vpop.f32.mrf.mxu0
  %v281 = vadd.f32 0.0, %v280
  %282 = vdwg.mxu0
  %283 = vmatpush.msra.mxu0 0.0
  %284 = vmatpush.msra.mxu0 0.0
  %285 = vmatpush.msra.mxu0 0.0
  %286 = vmatpush.msra.mxu0 0.0
  %287 = vmatpush.msra.mxu0 0.0
  %288 = vmatpush.msra.mxu0 0.0
  %289 = vmatpush.msra.mxu0 0.0
  %290 = vmatpush.msra.mxu0 0.0
  %291 = vmatpush.msra.mxu0 0.0
  %292 = vmatpush.msra.mxu0 0.0
  %293 = vmatpush.msra.mxu0 0.0
  %294 = vmatpush.msra.mxu0 0.0
  %295 = vmatpush.msra.mxu0 %v225
  %296 = vmatpush.msra.mxu0 %v221
  %297 = vmatpush.msra.mxu0 %v217
  %298 = vmatpush.msra.mxu0 %v213
  %299 = vmatmul.f32.gmra.mxu0 %v232
  %v300 = vpop.f32.mrf.mxu0
  %v301 = vadd.f32 0.0, %v300
  %302 = vmatmul.f32.gmra.mxu0 %v235
  %v303 = vpop.f32.mrf.mxu0
  %v304 = vadd.f32 0.0, %v303
  %305 = vdwg.mxu0
  %306 = vmatpush.msra.mxu0 0.0
  %307 = vmatpush.msra.mxu0 0.0
  %308 = vmatpush.msra.mxu0 0.0
  %309 = vmatpush.msra.mxu0 0.0
  %310 = vmatpush.msra.mxu0 0.0
  %311 = vmatpush.msra.mxu0 0.0
  %312 = vmatpush.msra.mxu0 0.0
  %313 = vmatpush.msra.mxu0 0.0
  %314 = vmatpush.msra.mxu0 0.0
  %315 = vmatpush.msra.mxu0 0.0
  %316 = vmatpush.msra.mxu0 0.0
  %317 = vmatpush.msra.mxu0 0.0
  %318 = vmatpush.msra.mxu0 %v226
  %319 = vmatpush.msra.mxu0 %v222
  %320 = vmatpush.msra.mxu0 %v218
  %321 = vmatpush.msra.mxu0 %v214
  %322 = vmatmul.f32.gmra.mxu0 %v232
  %v323 = vpop.f32.mrf.mxu0
  %v324 = vadd.f32 0.0, %v323
  %325 = vmatmul.f32.gmra.mxu0 %v235
  %v326 = vpop.f32.mrf.mxu0
  %v327 = vadd.f32 0.0, %v326
  %328 = vdwg.mxu0
  %v330 = vsel %vm230, %v152, 0
  %v333 = vsel %vm230, %v153, 0
  %335 = vmatpush.msra.mxu0 0.0
  %336 = vmatpush.msra.mxu0 0.0
  %337 = vmatpush.msra.mxu0 0.0
  %338 = vmatpush.msra.mxu0 0.0
  %339 = vmatpush.msra.mxu0 0.0
  %340 = vmatpush.msra.mxu0 0.0
  %341 = vmatpush.msra.mxu0 0.0
  %342 = vmatpush.msra.mxu0 0.0
  %343 = vmatpush.msra.mxu0 0.0
  %344 = vmatpush.msra.mxu0 0.0
  %345 = vmatpush.msra.mxu0 0.0
  %346 = vmatpush.msra.mxu0 0.0
  %347 = vmatpush.msra.mxu0 %v148
  %348 = vmatpush.msra.mxu0 %v144
  %349 = vmatpush.msra.mxu0 %v140
  %350 = vmatpush.msra.mxu0 %v136
  %351 = vmatmul.f32.gmra.mxu0 %v330
  %v352 = vpop.f32.mrf.mxu0
  %v353 = vadd.f32 %v255, %v352
  %354 = vmatmul.f32.gmra.mxu0 %v333
  %v355 = vpop.f32.mrf.mxu0
  %v356 = vadd.f32 %v258, %v355
  %357 = vdwg.mxu0
  %358 = vmatpush.msra.mxu0 0.0
  %359 = vmatpush.msra.mxu0 0.0
  %360 = vmatpush.msra.mxu0 0.0
  %361 = vmatpush.msra.mxu0 0.0
  %362 = vmatpush.msra.mxu0 0.0
  %363 = vmatpush.msra.mxu0 0.0
  %364 = vmatpush.msra.mxu0 0.0
  %365 = vmatpush.msra.mxu0 0.0
  %366 = vmatpush.msra.mxu0 0.0
  %367 = vmatpush.msra.mxu0 0.0
  %368 = vmatpush.msra.mxu0 0.0
  %369 = vmatpush.msra.mxu0 0.0
  %370 = vmatpush.msra.mxu0 %v149
  %371 = vmatpush.msra.mxu0 %v145
  %372 = vmatpush.msra.mxu0 %v141
  %373 = vmatpush.msra.mxu0 %v137
  %374 = vmatmul.f32.gmra.mxu0 %v330
  %v375 = vpop.f32.mrf.mxu0
  %v376 = vadd.f32 %v278, %v375
  %377 = vmatmul.f32.gmra.mxu0 %v333
  %v378 = vpop.f32.mrf.mxu0
  %v379 = vadd.f32 %v281, %v378
  %380 = vdwg.mxu0
  %381 = vmatpush.msra.mxu0 0.0
  %382 = vmatpush.msra.mxu0 0.0
  %383 = vmatpush.msra.mxu0 0.0
  %384 = vmatpush.msra.mxu0 0.0
  %385 = vmatpush.msra.mxu0 0.0
  %386 = vmatpush.msra.mxu0 0.0
  %387 = vmatpush.msra.mxu0 0.0
  %388 = vmatpush.msra.mxu0 0.0
  %389 = vmatpush.msra.mxu0 0.0
  %390 = vmatpush.msra.mxu0 0.0
  %391 = vmatpush.msra.mxu0 0.0
  %392 = vmatpush.msra.mxu0 0.0
  %393 = vmatpush.msra.mxu0 %v150
  %394 = vmatpush.msra.mxu0 %v146
  %395 = vmatpush.msra.mxu0 %v142
  %396 = vmatpush.msra.mxu0 %v138
  %397 = vmatmul.f32.gmra.mxu0 %v330
  %v398 = vpop.f32.mrf.mxu0
  %v399 = vadd.f32 %v301, %v398
  %400 = vmatmul.f32.gmra.mxu0 %v333
  %v401 = vpop.f32.mrf.mxu0
  %v402 = vadd.f32 %v304, %v401
  %403 = vdwg.mxu0
  %404 = vmatpush.msra.mxu0 0.0
  %405 = vmatpush.msra.mxu0 0.0
  %406 = vmatpush.msra.mxu0 0.0
  %407 = vmatpush.msra.mxu0 0.0
  %408 = vmatpush.msra.mxu0 0.0
  %409 = vmatpush.msra.mxu0 0.0
  %410 = vmatpush.msra.mxu0 0.0
  %411 = vmatpush.msra.mxu0 0.0
  %412 = vmatpush.msra.mxu0 0.0
  %413 = vmatpush.msra.mxu0 0.0
  %414 = vmatpush.msra.mxu0 0.0
  %415 = vmatpush.msra.mxu0 0.0
  %416 = vmatpush.msra.mxu0 %v151
  %417 = vmatpush.msra.mxu0 %v147
  %418 = vmatpush.msra.mxu0 %v143
  %419 = vmatpush.msra.mxu0 %v139
  %420 = vmatmul.f32.gmra.mxu0 %v330
  %v421 = vpop.f32.mrf.mxu0
  %v422 = vadd.f32 %v324, %v421
  %423 = vmatmul.f32.gmra.mxu0 %v333
  %v424 = vpop.f32.mrf.mxu0
  %v425 = vadd.f32 %v327, %v424
  %426 = vdwg.mxu0
  %427 = vrot.lane.b32.xlu0 %v14, 15
  %v428 = vpop.permute.xlu0 %427
  %429 = vrot.lane.b32.xlu0 %v18, 15
  %v430 = vpop.permute.xlu0 %429
  %431 = vrot.lane.b32.xlu0 %v22, 15
  %v432 = vpop.permute.xlu0 %431
  %433 = vrot.lane.b32.xlu0 %v26, 15
  %v434 = vpop.permute.xlu0 %433
  %435 = vrot.lane.b32.xlu0 %v15, 15
  %v436 = vpop.permute.xlu0 %435
  %437 = vrot.lane.b32.xlu0 %v19, 15
  %v438 = vpop.permute.xlu0 %437
  %439 = vrot.lane.b32.xlu0 %v23, 15
  %v440 = vpop.permute.xlu0 %439
  %441 = vrot.lane.b32.xlu0 %v27, 15
  %v442 = vpop.permute.xlu0 %441
  %443 = vrot.lane.b32.xlu0 %v16, 15
  %v444 = vpop.permute.xlu0 %443
  %445 = vrot.lane.b32.xlu0 %v20, 15
  %v446 = vpop.permute.xlu0 %445
  %447 = vrot.lane.b32.xlu0 %v24, 15
  %v448 = vpop.permute.xlu0 %447
  %449 = vrot.lane.b32.xlu0 %v28, 15
  %v450 = vpop.permute.xlu0 %449
  %451 = vrot.lane.b32.xlu0 %v17, 15
  %v452 = vpop.permute.xlu0 %451
  %453 = vrot.lane.b32.xlu0 %v21, 15
  %v454 = vpop.permute.xlu0 %453
  %455 = vrot.lane.b32.xlu0 %v25, 15
  %v456 = vpop.permute.xlu0 %455
  %457 = vrot.lane.b32.xlu0 %v29, 15
  %v458 = vpop.permute.xlu0 %457
  %vm459 = vcmp.lt.s32.totalorder %v31, 15
  %v460 = vsel %vm459, %v444, %v452
  %v461 = vsel %vm459, %v446, %v454
  %v462 = vsel %vm459, %v448, %v456
  %v463 = vsel %vm459, %v450, %v458
  %v464 = vsel %vm459, %v436, %v444
  %v465 = vsel %vm459, %v438, %v446
  %v466 = vsel %vm459, %v440, %v448
  %v467 = vsel %vm459, %v442, %v450
  %v468 = vsel %vm459, %v428, %v436
  %v469 = vsel %vm459, %v430, %v438
  %v470 = vsel %vm459, %v432, %v440
  %v471 = vsel %vm459, %v434, %v442
  %v472 = vsel %vm459, %v452, %v428
  %v473 = vsel %vm459, %v454, %v430
  %v474 = vsel %vm459, %v456, %v432
  %v475 = vsel %vm459, %v458, %v434
  %v476 = vsel %vm67, 1, 0
  %v477 = vsel %vm68, 1, 0
  %v478 = vsel %vm69, 1, 0
  %v479 = vsel %vm70, 1, 0
  %vm480 = vcmp.eq.s32.totalorder %v476, 1
  %vm481 = vcmp.eq.s32.totalorder %v477, 1
  %vm482 = vcmp.eq.s32.totalorder %v478, 1
  %vm483 = vcmp.eq.s32.totalorder %v479, 1
  %v484 = vsel %vm480, %v472, 0.0
  %v485 = vsel %vm481, %v468, 0.0
  %v486 = vsel %vm482, %v464, 0.0
  %v487 = vsel %vm483, %v460, 0.0
  %v488 = vsel %vm480, %v473, 0.0
  %v489 = vsel %vm481, %v469, 0.0
  %v490 = vsel %vm482, %v465, 0.0
  %v491 = vsel %vm483, %v461, 0.0
  %v492 = vsel %vm480, %v474, 0.0
  %v493 = vsel %vm481, %v470, 0.0
  %v494 = vsel %vm482, %v466, 0.0
  %v495 = vsel %vm483, %v462, 0.0
  %v496 = vsel %vm480, %v475, 0.0
  %v497 = vsel %vm481, %v471, 0.0
  %v498 = vsel %vm482, %v467, 0.0
  %v499 = vsel %vm483, %v463, 0.0
  %s500 = scalar_lea.vmem %s1, 32
  %v501 = vld [vmem:[%s500] sm:$0xff]
  %v502 = vld [vmem:[%s500 + $0x8] sm:$0xf]
  %v504 = vsel %vm230, %v501, 0
  %v507 = vsel %vm230, %v502, 0
  %509 = vmatpush.msra.mxu0 0.0
  %510 = vmatpush.msra.mxu0 0.0
  %511 = vmatpush.msra.mxu0 0.0
  %512 = vmatpush.msra.mxu0 0.0
  %513 = vmatpush.msra.mxu0 0.0
  %514 = vmatpush.msra.mxu0 0.0
  %515 = vmatpush.msra.mxu0 0.0
  %516 = vmatpush.msra.mxu0 0.0
  %517 = vmatpush.msra.mxu0 0.0
  %518 = vmatpush.msra.mxu0 0.0
  %519 = vmatpush.msra.mxu0 0.0
  %520 = vmatpush.msra.mxu0 0.0
  %521 = vmatpush.msra.mxu0 %v496
  %522 = vmatpush.msra.mxu0 %v492
  %523 = vmatpush.msra.mxu0 %v488
  %524 = vmatpush.msra.mxu0 %v484
  %525 = vmatmul.f32.gmra.mxu0 %v504
  %v526 = vpop.f32.mrf.mxu0
  %v527 = vadd.f32 0.0, %v526
  %528 = vmatmul.f32.gmra.mxu0 %v507
  %v529 = vpop.f32.mrf.mxu0
  %v530 = vadd.f32 0.0, %v529
  %531 = vdwg.mxu0
  %532 = vmatpush.msra.mxu0 0.0
  %533 = vmatpush.msra.mxu0 0.0
  %534 = vmatpush.msra.mxu0 0.0
  %535 = vmatpush.msra.mxu0 0.0
  %536 = vmatpush.msra.mxu0 0.0
  %537 = vmatpush.msra.mxu0 0.0
  %538 = vmatpush.msra.mxu0 0.0
  %539 = vmatpush.msra.mxu0 0.0
  %540 = vmatpush.msra.mxu0 0.0
  %541 = vmatpush.msra.mxu0 0.0
  %542 = vmatpush.msra.mxu0 0.0
  %543 = vmatpush.msra.mxu0 0.0
  %544 = vmatpush.msra.mxu0 %v497
  %545 = vmatpush.msra.mxu0 %v493
  %546 = vmatpush.msra.mxu0 %v489
  %547 = vmatpush.msra.mxu0 %v485
  %548 = vmatmul.f32.gmra.mxu0 %v504
  %v549 = vpop.f32.mrf.mxu0
  %v550 = vadd.f32 0.0, %v549
  %551 = vmatmul.f32.gmra.mxu0 %v507
  %v552 = vpop.f32.mrf.mxu0
  %v553 = vadd.f32 0.0, %v552
  %554 = vdwg.mxu0
  %555 = vmatpush.msra.mxu0 0.0
  %556 = vmatpush.msra.mxu0 0.0
  %557 = vmatpush.msra.mxu0 0.0
  %558 = vmatpush.msra.mxu0 0.0
  %559 = vmatpush.msra.mxu0 0.0
  %560 = vmatpush.msra.mxu0 0.0
  %561 = vmatpush.msra.mxu0 0.0
  %562 = vmatpush.msra.mxu0 0.0
  %563 = vmatpush.msra.mxu0 0.0
  %564 = vmatpush.msra.mxu0 0.0
  %565 = vmatpush.msra.mxu0 0.0
  %566 = vmatpush.msra.mxu0 0.0
  %567 = vmatpush.msra.mxu0 %v498
  %568 = vmatpush.msra.mxu0 %v494
  %569 = vmatpush.msra.mxu0 %v490
  %570 = vmatpush.msra.mxu0 %v486
  %571 = vmatmul.f32.gmra.mxu0 %v504
  %v572 = vpop.f32.mrf.mxu0
  %v573 = vadd.f32 0.0, %v572
  %574 = vmatmul.f32.gmra.mxu0 %v507
  %v575 = vpop.f32.mrf.mxu0
  %v576 = vadd.f32 0.0, %v575
  %577 = vdwg.mxu0
  %578 = vmatpush.msra.mxu0 0.0
  %579 = vmatpush.msra.mxu0 0.0
  %580 = vmatpush.msra.mxu0 0.0
  %581 = vmatpush.msra.mxu0 0.0
  %582 = vmatpush.msra.mxu0 0.0
  %583 = vmatpush.msra.mxu0 0.0
  %584 = vmatpush.msra.mxu0 0.0
  %585 = vmatpush.msra.mxu0 0.0
  %586 = vmatpush.msra.mxu0 0.0
  %587 = vmatpush.msra.mxu0 0.0
  %588 = vmatpush.msra.mxu0 0.0
  %589 = vmatpush.msra.mxu0 0.0
  %590 = vmatpush.msra.mxu0 %v499
  %591 = vmatpush.msra.mxu0 %v495
  %592 = vmatpush.msra.mxu0 %v491
  %593 = vmatpush.msra.mxu0 %v487
  %594 = vmatmul.f32.gmra.mxu0 %v504
  %v595 = vpop.f32.mrf.mxu0
  %v596 = vadd.f32 0.0, %v595
  %597 = vmatmul.f32.gmra.mxu0 %v507
  %v598 = vpop.f32.mrf.mxu0
  %v599 = vadd.f32 0.0, %v598
  %600 = vdwg.mxu0
  %v601 = vadd.f32 %v353, %v527
  %v602 = vadd.f32 %v376, %v550
  %v603 = vadd.f32 %v399, %v573
  %v604 = vadd.f32 %v422, %v596
  %v605 = vadd.f32 %v356, %v530
  %v606 = vadd.f32 %v379, %v553
  %v607 = vadd.f32 %v402, %v576
  %v608 = vadd.f32 %v425, %v599
  %609 = vrot.lane.b32.xlu0 %v14, 1
  %v610 = vpop.permute.xlu0 %609
  %611 = vrot.lane.b32.xlu0 %v18, 1
  %v612 = vpop.permute.xlu0 %611
  %613 = vrot.lane.b32.xlu0 %v22, 1
  %v614 = vpop.permute.xlu0 %613
  %615 = vrot.lane.b32.xlu0 %v26, 1
  %v616 = vpop.permute.xlu0 %615
  %617 = vrot.lane.b32.xlu0 %v15, 1
  %v618 = vpop.permute.xlu0 %617
  %619 = vrot.lane.b32.xlu0 %v19, 1
  %v620 = vpop.permute.xlu0 %619
  %621 = vrot.lane.b32.xlu0 %v23, 1
  %v622 = vpop.permute.xlu0 %621
  %623 = vrot.lane.b32.xlu0 %v27, 1
  %v624 = vpop.permute.xlu0 %623
  %625 = vrot.lane.b32.xlu0 %v16, 1
  %v626 = vpop.permute.xlu0 %625
  %627 = vrot.lane.b32.xlu0 %v20, 1
  %v628 = vpop.permute.xlu0 %627
  %629 = vrot.lane.b32.xlu0 %v24, 1
  %v630 = vpop.permute.xlu0 %629
  %631 = vrot.lane.b32.xlu0 %v28, 1
  %v632 = vpop.permute.xlu0 %631
  %633 = vrot.lane.b32.xlu0 %v17, 1
  %v634 = vpop.permute.xlu0 %633
  %635 = vrot.lane.b32.xlu0 %v21, 1
  %v636 = vpop.permute.xlu0 %635
  %637 = vrot.lane.b32.xlu0 %v25, 1
  %v638 = vpop.permute.xlu0 %637
  %639 = vrot.lane.b32.xlu0 %v29, 1
  %v640 = vpop.permute.xlu0 %639
  %vm641 = vcmp.lt.s32.totalorder %v31, 1
  %v642 = vsel %vm641, %v626, %v634
  %v643 = vsel %vm641, %v628, %v636
  %v644 = vsel %vm641, %v630, %v638
  %v645 = vsel %vm641, %v632, %v640
  %v646 = vsel %vm641, %v618, %v626
  %v647 = vsel %vm641, %v620, %v628
  %v648 = vsel %vm641, %v622, %v630
  %v649 = vsel %vm641, %v624, %v632
  %v650 = vsel %vm641, %v610, %v618
  %v651 = vsel %vm641, %v612, %v620
  %v652 = vsel %vm641, %v614, %v622
  %v653 = vsel %vm641, %v616, %v624
  %v654 = vsel %vm641, %v634, %v610
  %v655 = vsel %vm641, %v636, %v612
  %v656 = vsel %vm641, %v638, %v614
  %v657 = vsel %vm641, %v640, %v616
  %v658 = vsel %vm47, 1, 0
  %v659 = vsel %vm48, 1, 0
  %v660 = vsel %vm49, 1, 0
  %v661 = vsel %vm50, 1, 0
  %vm662 = vcmp.eq.s32.totalorder %v658, 1
  %vm663 = vcmp.eq.s32.totalorder %v659, 1
  %vm664 = vcmp.eq.s32.totalorder %v660, 1
  %vm665 = vcmp.eq.s32.totalorder %v661, 1
  %v666 = vsel %vm662, %v654, 0.0
  %v667 = vsel %vm663, %v650, 0.0
  %v668 = vsel %vm664, %v646, 0.0
  %v669 = vsel %vm665, %v642, 0.0
  %v670 = vsel %vm662, %v655, 0.0
  %v671 = vsel %vm663, %v651, 0.0
  %v672 = vsel %vm664, %v647, 0.0
  %v673 = vsel %vm665, %v643, 0.0
  %v674 = vsel %vm662, %v656, 0.0
  %v675 = vsel %vm663, %v652, 0.0
  %v676 = vsel %vm664, %v648, 0.0
  %v677 = vsel %vm665, %v644, 0.0
  %v678 = vsel %vm662, %v657, 0.0
  %v679 = vsel %vm663, %v653, 0.0
  %v680 = vsel %vm664, %v649, 0.0
  %v681 = vsel %vm665, %v645, 0.0
  %s682 = scalar_lea.vmem %s1, 48
  %v683 = vld [vmem:[%s682] sm:$0xff]
  %v684 = vld [vmem:[%s682 + $0x8] sm:$0xf]
  %v686 = vsel %vm230, %v683, 0
  %v689 = vsel %vm230, %v684, 0
  %691 = vmatpush.msra.mxu0 0.0
  %692 = vmatpush.msra.mxu0 0.0
  %693 = vmatpush.msra.mxu0 0.0
  %694 = vmatpush.msra.mxu0 0.0
  %695 = vmatpush.msra.mxu0 0.0
  %696 = vmatpush.msra.mxu0 0.0
  %697 = vmatpush.msra.mxu0 0.0
  %698 = vmatpush.msra.mxu0 0.0
  %699 = vmatpush.msra.mxu0 0.0
  %700 = vmatpush.msra.mxu0 0.0
  %701 = vmatpush.msra.mxu0 0.0
  %702 = vmatpush.msra.mxu0 0.0
  %703 = vmatpush.msra.mxu0 %v678
  %704 = vmatpush.msra.mxu0 %v674
  %705 = vmatpush.msra.mxu0 %v670
  %706 = vmatpush.msra.mxu0 %v666
  %707 = vmatmul.f32.gmra.mxu0 %v686
  %v708 = vpop.f32.mrf.mxu0
  %v709 = vadd.f32 0.0, %v708
  %710 = vmatmul.f32.gmra.mxu0 %v689
  %v711 = vpop.f32.mrf.mxu0
  %v712 = vadd.f32 0.0, %v711
  %713 = vdwg.mxu0
  %714 = vmatpush.msra.mxu0 0.0
  %715 = vmatpush.msra.mxu0 0.0
  %716 = vmatpush.msra.mxu0 0.0
  %717 = vmatpush.msra.mxu0 0.0
  %718 = vmatpush.msra.mxu0 0.0
  %719 = vmatpush.msra.mxu0 0.0
  %720 = vmatpush.msra.mxu0 0.0
  %721 = vmatpush.msra.mxu0 0.0
  %722 = vmatpush.msra.mxu0 0.0
  %723 = vmatpush.msra.mxu0 0.0
  %724 = vmatpush.msra.mxu0 0.0
  %725 = vmatpush.msra.mxu0 0.0
  %726 = vmatpush.msra.mxu0 %v679
  %727 = vmatpush.msra.mxu0 %v675
  %728 = vmatpush.msra.mxu0 %v671
  %729 = vmatpush.msra.mxu0 %v667
  %730 = vmatmul.f32.gmra.mxu0 %v686
  %v731 = vpop.f32.mrf.mxu0
  %v732 = vadd.f32 0.0, %v731
  %733 = vmatmul.f32.gmra.mxu0 %v689
  %v734 = vpop.f32.mrf.mxu0
  %v735 = vadd.f32 0.0, %v734
  %736 = vdwg.mxu0
  %737 = vmatpush.msra.mxu0 0.0
  %738 = vmatpush.msra.mxu0 0.0
  %739 = vmatpush.msra.mxu0 0.0
  %740 = vmatpush.msra.mxu0 0.0
  %741 = vmatpush.msra.mxu0 0.0
  %742 = vmatpush.msra.mxu0 0.0
  %743 = vmatpush.msra.mxu0 0.0
  %744 = vmatpush.msra.mxu0 0.0
  %745 = vmatpush.msra.mxu0 0.0
  %746 = vmatpush.msra.mxu0 0.0
  %747 = vmatpush.msra.mxu0 0.0
  %748 = vmatpush.msra.mxu0 0.0
  %749 = vmatpush.msra.mxu0 %v680
  %750 = vmatpush.msra.mxu0 %v676
  %751 = vmatpush.msra.mxu0 %v672
  %752 = vmatpush.msra.mxu0 %v668
  %753 = vmatmul.f32.gmra.mxu0 %v686
  %v754 = vpop.f32.mrf.mxu0
  %v755 = vadd.f32 0.0, %v754
  %756 = vmatmul.f32.gmra.mxu0 %v689
  %v757 = vpop.f32.mrf.mxu0
  %v758 = vadd.f32 0.0, %v757
  %759 = vdwg.mxu0
  %760 = vmatpush.msra.mxu0 0.0
  %761 = vmatpush.msra.mxu0 0.0
  %762 = vmatpush.msra.mxu0 0.0
  %763 = vmatpush.msra.mxu0 0.0
  %764 = vmatpush.msra.mxu0 0.0
  %765 = vmatpush.msra.mxu0 0.0
  %766 = vmatpush.msra.mxu0 0.0
  %767 = vmatpush.msra.mxu0 0.0
  %768 = vmatpush.msra.mxu0 0.0
  %769 = vmatpush.msra.mxu0 0.0
  %770 = vmatpush.msra.mxu0 0.0
  %771 = vmatpush.msra.mxu0 0.0
  %772 = vmatpush.msra.mxu0 %v681
  %773 = vmatpush.msra.mxu0 %v677
  %774 = vmatpush.msra.mxu0 %v673
  %775 = vmatpush.msra.mxu0 %v669
  %776 = vmatmul.f32.gmra.mxu0 %v686
  %v777 = vpop.f32.mrf.mxu0
  %v778 = vadd.f32 0.0, %v777
  %779 = vmatmul.f32.gmra.mxu0 %v689
  %v780 = vpop.f32.mrf.mxu0
  %v781 = vadd.f32 0.0, %v780
  %782 = vdwg.mxu0
  %v783 = vadd.f32 %v601, %v709
  %v784 = vadd.f32 %v602, %v732
  %v785 = vadd.f32 %v603, %v755
  %v786 = vadd.f32 %v604, %v778
  %v787 = vadd.f32 %v605, %v712
  %v788 = vadd.f32 %v606, %v735
  %v789 = vadd.f32 %v607, %v758
  %v790 = vadd.f32 %v608, %v781
  %s791 = scalar_lea.vmem %s1, 64
  %v792 = vld [vmem:[%s791] sm:$0xff]
  %v793 = vld [vmem:[%s791 + $0x8] sm:$0xf]
  %v795 = vsel %vm230, %v792, 0
  %v798 = vsel %vm230, %v793, 0
  %800 = vmatpush.msra.mxu0 0.0
  %801 = vmatpush.msra.mxu0 0.0
  %802 = vmatpush.msra.mxu0 0.0
  %803 = vmatpush.msra.mxu0 0.0
  %804 = vmatpush.msra.mxu0 0.0
  %805 = vmatpush.msra.mxu0 0.0
  %806 = vmatpush.msra.mxu0 0.0
  %807 = vmatpush.msra.mxu0 0.0
  %808 = vmatpush.msra.mxu0 0.0
  %809 = vmatpush.msra.mxu0 0.0
  %810 = vmatpush.msra.mxu0 0.0
  %811 = vmatpush.msra.mxu0 0.0
  %812 = vmatpush.msra.mxu0 %v26
  %813 = vmatpush.msra.mxu0 %v22
  %814 = vmatpush.msra.mxu0 %v18
  %815 = vmatpush.msra.mxu0 %v14
  %816 = vmatmul.f32.gmra.mxu0 %v795
  %v817 = vpop.f32.mrf.mxu0
  %v818 = vadd.f32 0.0, %v817
  %819 = vmatmul.f32.gmra.mxu0 %v798
  %v820 = vpop.f32.mrf.mxu0
  %v821 = vadd.f32 0.0, %v820
  %822 = vdwg.mxu0
  %823 = vmatpush.msra.mxu0 0.0
  %824 = vmatpush.msra.mxu0 0.0
  %825 = vmatpush.msra.mxu0 0.0
  %826 = vmatpush.msra.mxu0 0.0
  %827 = vmatpush.msra.mxu0 0.0
  %828 = vmatpush.msra.mxu0 0.0
  %829 = vmatpush.msra.mxu0 0.0
  %830 = vmatpush.msra.mxu0 0.0
  %831 = vmatpush.msra.mxu0 0.0
  %832 = vmatpush.msra.mxu0 0.0
  %833 = vmatpush.msra.mxu0 0.0
  %834 = vmatpush.msra.mxu0 0.0
  %835 = vmatpush.msra.mxu0 %v27
  %836 = vmatpush.msra.mxu0 %v23
  %837 = vmatpush.msra.mxu0 %v19
  %838 = vmatpush.msra.mxu0 %v15
  %839 = vmatmul.f32.gmra.mxu0 %v795
  %v840 = vpop.f32.mrf.mxu0
  %v841 = vadd.f32 0.0, %v840
  %842 = vmatmul.f32.gmra.mxu0 %v798
  %v843 = vpop.f32.mrf.mxu0
  %v844 = vadd.f32 0.0, %v843
  %845 = vdwg.mxu0
  %846 = vmatpush.msra.mxu0 0.0
  %847 = vmatpush.msra.mxu0 0.0
  %848 = vmatpush.msra.mxu0 0.0
  %849 = vmatpush.msra.mxu0 0.0
  %850 = vmatpush.msra.mxu0 0.0
  %851 = vmatpush.msra.mxu0 0.0
  %852 = vmatpush.msra.mxu0 0.0
  %853 = vmatpush.msra.mxu0 0.0
  %854 = vmatpush.msra.mxu0 0.0
  %855 = vmatpush.msra.mxu0 0.0
  %856 = vmatpush.msra.mxu0 0.0
  %857 = vmatpush.msra.mxu0 0.0
  %858 = vmatpush.msra.mxu0 %v28
  %859 = vmatpush.msra.mxu0 %v24
  %860 = vmatpush.msra.mxu0 %v20
  %861 = vmatpush.msra.mxu0 %v16
  %862 = vmatmul.f32.gmra.mxu0 %v795
  %v863 = vpop.f32.mrf.mxu0
  %v864 = vadd.f32 0.0, %v863
  %865 = vmatmul.f32.gmra.mxu0 %v798
  %v866 = vpop.f32.mrf.mxu0
  %v867 = vadd.f32 0.0, %v866
  %868 = vdwg.mxu0
  %869 = vmatpush.msra.mxu0 0.0
  %870 = vmatpush.msra.mxu0 0.0
  %871 = vmatpush.msra.mxu0 0.0
  %872 = vmatpush.msra.mxu0 0.0
  %873 = vmatpush.msra.mxu0 0.0
  %874 = vmatpush.msra.mxu0 0.0
  %875 = vmatpush.msra.mxu0 0.0
  %876 = vmatpush.msra.mxu0 0.0
  %877 = vmatpush.msra.mxu0 0.0
  %878 = vmatpush.msra.mxu0 0.0
  %879 = vmatpush.msra.mxu0 0.0
  %880 = vmatpush.msra.mxu0 0.0
  %881 = vmatpush.msra.mxu0 %v29
  %882 = vmatpush.msra.mxu0 %v25
  %883 = vmatpush.msra.mxu0 %v21
  %884 = vmatpush.msra.mxu0 %v17
  %885 = vmatmul.f32.gmra.mxu0 %v795
  %v886 = vpop.f32.mrf.mxu0
  %v887 = vadd.f32 0.0, %v886
  %888 = vmatmul.f32.gmra.mxu0 %v798
  %v889 = vpop.f32.mrf.mxu0
  %v890 = vadd.f32 0.0, %v889
  %891 = vdwg.mxu0
  %v892 = vadd.f32 %v783, %v818
  %v893 = vadd.f32 %v784, %v841
  %v894 = vadd.f32 %v785, %v864
  %v895 = vadd.f32 %v786, %v887
  %v896 = vadd.f32 %v787, %v821
  %v897 = vadd.f32 %v788, %v844
  %v898 = vadd.f32 %v789, %v867
  %v899 = vadd.f32 %v790, %v890
  %900 = vrot.lane.b32.xlu0 %v14, 127
  %v901 = vpop.permute.xlu0 %900
  %902 = vrot.lane.b32.xlu0 %v18, 127
  %v903 = vpop.permute.xlu0 %902
  %904 = vrot.lane.b32.xlu0 %v22, 127
  %v905 = vpop.permute.xlu0 %904
  %906 = vrot.lane.b32.xlu0 %v26, 127
  %v907 = vpop.permute.xlu0 %906
  %908 = vrot.lane.b32.xlu0 %v15, 127
  %v909 = vpop.permute.xlu0 %908
  %910 = vrot.lane.b32.xlu0 %v19, 127
  %v911 = vpop.permute.xlu0 %910
  %912 = vrot.lane.b32.xlu0 %v23, 127
  %v913 = vpop.permute.xlu0 %912
  %914 = vrot.lane.b32.xlu0 %v27, 127
  %v915 = vpop.permute.xlu0 %914
  %916 = vrot.lane.b32.xlu0 %v16, 127
  %v917 = vpop.permute.xlu0 %916
  %918 = vrot.lane.b32.xlu0 %v20, 127
  %v919 = vpop.permute.xlu0 %918
  %920 = vrot.lane.b32.xlu0 %v24, 127
  %v921 = vpop.permute.xlu0 %920
  %922 = vrot.lane.b32.xlu0 %v28, 127
  %v923 = vpop.permute.xlu0 %922
  %924 = vrot.lane.b32.xlu0 %v17, 127
  %v925 = vpop.permute.xlu0 %924
  %926 = vrot.lane.b32.xlu0 %v21, 127
  %v927 = vpop.permute.xlu0 %926
  %928 = vrot.lane.b32.xlu0 %v25, 127
  %v929 = vpop.permute.xlu0 %928
  %930 = vrot.lane.b32.xlu0 %v29, 127
  %v931 = vpop.permute.xlu0 %930
  %vm932 = vcmp.lt.s32.totalorder %v31, 127
  %v933 = vsel %vm932, %v917, %v925
  %v934 = vsel %vm932, %v919, %v927
  %v935 = vsel %vm932, %v921, %v929
  %v936 = vsel %vm932, %v923, %v931
  %v937 = vsel %vm932, %v909, %v917
  %v938 = vsel %vm932, %v911, %v919
  %v939 = vsel %vm932, %v913, %v921
  %v940 = vsel %vm932, %v915, %v923
  %v941 = vsel %vm932, %v901, %v909
  %v942 = vsel %vm932, %v903, %v911
  %v943 = vsel %vm932, %v905, %v913
  %v944 = vsel %vm932, %v907, %v915
  %v945 = vsel %vm932, %v925, %v901
  %v946 = vsel %vm932, %v927, %v903
  %v947 = vsel %vm932, %v929, %v905
  %v948 = vsel %vm932, %v931, %v907
  %v949 = vsel %vm51, 1, 0
  %v950 = vsel %vm52, 1, 0
  %v951 = vsel %vm53, 1, 0
  %v952 = vsel %vm54, 1, 0
  %vm953 = vcmp.eq.s32.totalorder %v949, 1
  %vm954 = vcmp.eq.s32.totalorder %v950, 1
  %vm955 = vcmp.eq.s32.totalorder %v951, 1
  %vm956 = vcmp.eq.s32.totalorder %v952, 1
  %v957 = vsel %vm953, %v941, 0.0
  %v958 = vsel %vm954, %v937, 0.0
  %v959 = vsel %vm955, %v933, 0.0
  %v960 = vsel %vm956, %v945, 0.0
  %v961 = vsel %vm953, %v942, 0.0
  %v962 = vsel %vm954, %v938, 0.0
  %v963 = vsel %vm955, %v934, 0.0
  %v964 = vsel %vm956, %v946, 0.0
  %v965 = vsel %vm953, %v943, 0.0
  %v966 = vsel %vm954, %v939, 0.0
  %v967 = vsel %vm955, %v935, 0.0
  %v968 = vsel %vm956, %v947, 0.0
  %v969 = vsel %vm953, %v944, 0.0
  %v970 = vsel %vm954, %v940, 0.0
  %v971 = vsel %vm955, %v936, 0.0
  %v972 = vsel %vm956, %v948, 0.0
  %s973 = scalar_lea.vmem %s1, 80
  %v974 = vld [vmem:[%s973] sm:$0xff]
  %v975 = vld [vmem:[%s973 + $0x8] sm:$0xf]
  %v977 = vsel %vm230, %v974, 0
  %v980 = vsel %vm230, %v975, 0
  %982 = vmatpush.msra.mxu0 0.0
  %983 = vmatpush.msra.mxu0 0.0
  %984 = vmatpush.msra.mxu0 0.0
  %985 = vmatpush.msra.mxu0 0.0
  %986 = vmatpush.msra.mxu0 0.0
  %987 = vmatpush.msra.mxu0 0.0
  %988 = vmatpush.msra.mxu0 0.0
  %989 = vmatpush.msra.mxu0 0.0
  %990 = vmatpush.msra.mxu0 0.0
  %991 = vmatpush.msra.mxu0 0.0
  %992 = vmatpush.msra.mxu0 0.0
  %993 = vmatpush.msra.mxu0 0.0
  %994 = vmatpush.msra.mxu0 %v969
  %995 = vmatpush.msra.mxu0 %v965
  %996 = vmatpush.msra.mxu0 %v961
  %997 = vmatpush.msra.mxu0 %v957
  %998 = vmatmul.f32.gmra.mxu0 %v977
  %v999 = vpop.f32.mrf.mxu0
  %v1000 = vadd.f32 0.0, %v999
  %1001 = vmatmul.f32.gmra.mxu0 %v980
  %v1002 = vpop.f32.mrf.mxu0
  %v1003 = vadd.f32 0.0, %v1002
  %1004 = vdwg.mxu0
  %1005 = vmatpush.msra.mxu0 0.0
  %1006 = vmatpush.msra.mxu0 0.0
  %1007 = vmatpush.msra.mxu0 0.0
  %1008 = vmatpush.msra.mxu0 0.0
  %1009 = vmatpush.msra.mxu0 0.0
  %1010 = vmatpush.msra.mxu0 0.0
  %1011 = vmatpush.msra.mxu0 0.0
  %1012 = vmatpush.msra.mxu0 0.0
  %1013 = vmatpush.msra.mxu0 0.0
  %1014 = vmatpush.msra.mxu0 0.0
  %1015 = vmatpush.msra.mxu0 0.0
  %1016 = vmatpush.msra.mxu0 0.0
  %1017 = vmatpush.msra.mxu0 %v970
  %1018 = vmatpush.msra.mxu0 %v966
  %1019 = vmatpush.msra.mxu0 %v962
  %1020 = vmatpush.msra.mxu0 %v958
  %1021 = vmatmul.f32.gmra.mxu0 %v977
  %v1022 = vpop.f32.mrf.mxu0
  %v1023 = vadd.f32 0.0, %v1022
  %1024 = vmatmul.f32.gmra.mxu0 %v980
  %v1025 = vpop.f32.mrf.mxu0
  %v1026 = vadd.f32 0.0, %v1025
  %1027 = vdwg.mxu0
  %1028 = vmatpush.msra.mxu0 0.0
  %1029 = vmatpush.msra.mxu0 0.0
  %1030 = vmatpush.msra.mxu0 0.0
  %1031 = vmatpush.msra.mxu0 0.0
  %1032 = vmatpush.msra.mxu0 0.0
  %1033 = vmatpush.msra.mxu0 0.0
  %1034 = vmatpush.msra.mxu0 0.0
  %1035 = vmatpush.msra.mxu0 0.0
  %1036 = vmatpush.msra.mxu0 0.0
  %1037 = vmatpush.msra.mxu0 0.0
  %1038 = vmatpush.msra.mxu0 0.0
  %1039 = vmatpush.msra.mxu0 0.0
  %1040 = vmatpush.msra.mxu0 %v971
  %1041 = vmatpush.msra.mxu0 %v967
  %1042 = vmatpush.msra.mxu0 %v963
  %1043 = vmatpush.msra.mxu0 %v959
  %1044 = vmatmul.f32.gmra.mxu0 %v977
  %v1045 = vpop.f32.mrf.mxu0
  %v1046 = vadd.f32 0.0, %v1045
  %1047 = vmatmul.f32.gmra.mxu0 %v980
  %v1048 = vpop.f32.mrf.mxu0
  %v1049 = vadd.f32 0.0, %v1048
  %1050 = vdwg.mxu0
  %1051 = vmatpush.msra.mxu0 0.0
  %1052 = vmatpush.msra.mxu0 0.0
  %1053 = vmatpush.msra.mxu0 0.0
  %1054 = vmatpush.msra.mxu0 0.0
  %1055 = vmatpush.msra.mxu0 0.0
  %1056 = vmatpush.msra.mxu0 0.0
  %1057 = vmatpush.msra.mxu0 0.0
  %1058 = vmatpush.msra.mxu0 0.0
  %1059 = vmatpush.msra.mxu0 0.0
  %1060 = vmatpush.msra.mxu0 0.0
  %1061 = vmatpush.msra.mxu0 0.0
  %1062 = vmatpush.msra.mxu0 0.0
  %1063 = vmatpush.msra.mxu0 %v972
  %1064 = vmatpush.msra.mxu0 %v968
  %1065 = vmatpush.msra.mxu0 %v964
  %1066 = vmatpush.msra.mxu0 %v960
  %1067 = vmatmul.f32.gmra.mxu0 %v977
  %v1068 = vpop.f32.mrf.mxu0
  %v1069 = vadd.f32 0.0, %v1068
  %1070 = vmatmul.f32.gmra.mxu0 %v980
  %v1071 = vpop.f32.mrf.mxu0
  %v1072 = vadd.f32 0.0, %v1071
  %1073 = vdwg.mxu0
  %v1074 = vadd.f32 %v892, %v1000
  %v1075 = vadd.f32 %v893, %v1023
  %v1076 = vadd.f32 %v894, %v1046
  %v1077 = vadd.f32 %v895, %v1069
  %v1078 = vadd.f32 %v896, %v1003
  %v1079 = vadd.f32 %v897, %v1026
  %v1080 = vadd.f32 %v898, %v1049
  %v1081 = vadd.f32 %v899, %v1072
  %1082 = vrot.lane.b32.xlu0 %v14, 113
  %v1083 = vpop.permute.xlu0 %1082
  %1084 = vrot.lane.b32.xlu0 %v18, 113
  %v1085 = vpop.permute.xlu0 %1084
  %1086 = vrot.lane.b32.xlu0 %v22, 113
  %v1087 = vpop.permute.xlu0 %1086
  %1088 = vrot.lane.b32.xlu0 %v26, 113
  %v1089 = vpop.permute.xlu0 %1088
  %1090 = vrot.lane.b32.xlu0 %v15, 113
  %v1091 = vpop.permute.xlu0 %1090
  %1092 = vrot.lane.b32.xlu0 %v19, 113
  %v1093 = vpop.permute.xlu0 %1092
  %1094 = vrot.lane.b32.xlu0 %v23, 113
  %v1095 = vpop.permute.xlu0 %1094
  %1096 = vrot.lane.b32.xlu0 %v27, 113
  %v1097 = vpop.permute.xlu0 %1096
  %1098 = vrot.lane.b32.xlu0 %v16, 113
  %v1099 = vpop.permute.xlu0 %1098
  %1100 = vrot.lane.b32.xlu0 %v20, 113
  %v1101 = vpop.permute.xlu0 %1100
  %1102 = vrot.lane.b32.xlu0 %v24, 113
  %v1103 = vpop.permute.xlu0 %1102
  %1104 = vrot.lane.b32.xlu0 %v28, 113
  %v1105 = vpop.permute.xlu0 %1104
  %1106 = vrot.lane.b32.xlu0 %v17, 113
  %v1107 = vpop.permute.xlu0 %1106
  %1108 = vrot.lane.b32.xlu0 %v21, 113
  %v1109 = vpop.permute.xlu0 %1108
  %1110 = vrot.lane.b32.xlu0 %v25, 113
  %v1111 = vpop.permute.xlu0 %1110
  %1112 = vrot.lane.b32.xlu0 %v29, 113
  %v1113 = vpop.permute.xlu0 %1112
  %vm1114 = vcmp.lt.s32.totalorder %v31, 113
  %v1115 = vsel %vm1114, %v1099, %v1107
  %v1116 = vsel %vm1114, %v1101, %v1109
  %v1117 = vsel %vm1114, %v1103, %v1111
  %v1118 = vsel %vm1114, %v1105, %v1113
  %v1119 = vsel %vm1114, %v1091, %v1099
  %v1120 = vsel %vm1114, %v1093, %v1101
  %v1121 = vsel %vm1114, %v1095, %v1103
  %v1122 = vsel %vm1114, %v1097, %v1105
  %v1123 = vsel %vm1114, %v1083, %v1091
  %v1124 = vsel %vm1114, %v1085, %v1093
  %v1125 = vsel %vm1114, %v1087, %v1095
  %v1126 = vsel %vm1114, %v1089, %v1097
  %v1127 = vsel %vm1114, %v1107, %v1083
  %v1128 = vsel %vm1114, %v1109, %v1085
  %v1129 = vsel %vm1114, %v1111, %v1087
  %v1130 = vsel %vm1114, %v1113, %v1089
  %v1131 = vsel %vm71, 1, 0
  %v1132 = vsel %vm72, 1, 0
  %v1133 = vsel %vm73, 1, 0
  %v1134 = vsel %vm74, 1, 0
  %vm1135 = vcmp.eq.s32.totalorder %v1131, 1
  %vm1136 = vcmp.eq.s32.totalorder %v1132, 1
  %vm1137 = vcmp.eq.s32.totalorder %v1133, 1
  %vm1138 = vcmp.eq.s32.totalorder %v1134, 1
  %v1139 = vsel %vm1135, %v1123, 0.0
  %v1140 = vsel %vm1136, %v1119, 0.0
  %v1141 = vsel %vm1137, %v1115, 0.0
  %v1142 = vsel %vm1138, %v1127, 0.0
  %v1143 = vsel %vm1135, %v1124, 0.0
  %v1144 = vsel %vm1136, %v1120, 0.0
  %v1145 = vsel %vm1137, %v1116, 0.0
  %v1146 = vsel %vm1138, %v1128, 0.0
  %v1147 = vsel %vm1135, %v1125, 0.0
  %v1148 = vsel %vm1136, %v1121, 0.0
  %v1149 = vsel %vm1137, %v1117, 0.0
  %v1150 = vsel %vm1138, %v1129, 0.0
  %v1151 = vsel %vm1135, %v1126, 0.0
  %v1152 = vsel %vm1136, %v1122, 0.0
  %v1153 = vsel %vm1137, %v1118, 0.0
  %v1154 = vsel %vm1138, %v1130, 0.0
  %s1155 = scalar_lea.vmem %s1, 96
  %v1156 = vld [vmem:[%s1155] sm:$0xff]
  %v1157 = vld [vmem:[%s1155 + $0x8] sm:$0xf]
  %v1159 = vsel %vm230, %v1156, 0
  %v1162 = vsel %vm230, %v1157, 0
  %1164 = vmatpush.msra.mxu0 0.0
  %1165 = vmatpush.msra.mxu0 0.0
  %1166 = vmatpush.msra.mxu0 0.0
  %1167 = vmatpush.msra.mxu0 0.0
  %1168 = vmatpush.msra.mxu0 0.0
  %1169 = vmatpush.msra.mxu0 0.0
  %1170 = vmatpush.msra.mxu0 0.0
  %1171 = vmatpush.msra.mxu0 0.0
  %1172 = vmatpush.msra.mxu0 0.0
  %1173 = vmatpush.msra.mxu0 0.0
  %1174 = vmatpush.msra.mxu0 0.0
  %1175 = vmatpush.msra.mxu0 0.0
  %1176 = vmatpush.msra.mxu0 %v1151
  %1177 = vmatpush.msra.mxu0 %v1147
  %1178 = vmatpush.msra.mxu0 %v1143
  %1179 = vmatpush.msra.mxu0 %v1139
  %1180 = vmatmul.f32.gmra.mxu0 %v1159
  %v1181 = vpop.f32.mrf.mxu0
  %v1182 = vadd.f32 0.0, %v1181
  %1183 = vmatmul.f32.gmra.mxu0 %v1162
  %v1184 = vpop.f32.mrf.mxu0
  %v1185 = vadd.f32 0.0, %v1184
  %1186 = vdwg.mxu0
  %1187 = vmatpush.msra.mxu0 0.0
  %1188 = vmatpush.msra.mxu0 0.0
  %1189 = vmatpush.msra.mxu0 0.0
  %1190 = vmatpush.msra.mxu0 0.0
  %1191 = vmatpush.msra.mxu0 0.0
  %1192 = vmatpush.msra.mxu0 0.0
  %1193 = vmatpush.msra.mxu0 0.0
  %1194 = vmatpush.msra.mxu0 0.0
  %1195 = vmatpush.msra.mxu0 0.0
  %1196 = vmatpush.msra.mxu0 0.0
  %1197 = vmatpush.msra.mxu0 0.0
  %1198 = vmatpush.msra.mxu0 0.0
  %1199 = vmatpush.msra.mxu0 %v1152
  %1200 = vmatpush.msra.mxu0 %v1148
  %1201 = vmatpush.msra.mxu0 %v1144
  %1202 = vmatpush.msra.mxu0 %v1140
  %1203 = vmatmul.f32.gmra.mxu0 %v1159
  %v1204 = vpop.f32.mrf.mxu0
  %v1205 = vadd.f32 0.0, %v1204
  %1206 = vmatmul.f32.gmra.mxu0 %v1162
  %v1207 = vpop.f32.mrf.mxu0
  %v1208 = vadd.f32 0.0, %v1207
  %1209 = vdwg.mxu0
  %1210 = vmatpush.msra.mxu0 0.0
  %1211 = vmatpush.msra.mxu0 0.0
  %1212 = vmatpush.msra.mxu0 0.0
  %1213 = vmatpush.msra.mxu0 0.0
  %1214 = vmatpush.msra.mxu0 0.0
  %1215 = vmatpush.msra.mxu0 0.0
  %1216 = vmatpush.msra.mxu0 0.0
  %1217 = vmatpush.msra.mxu0 0.0
  %1218 = vmatpush.msra.mxu0 0.0
  %1219 = vmatpush.msra.mxu0 0.0
  %1220 = vmatpush.msra.mxu0 0.0
  %1221 = vmatpush.msra.mxu0 0.0
  %1222 = vmatpush.msra.mxu0 %v1153
  %1223 = vmatpush.msra.mxu0 %v1149
  %1224 = vmatpush.msra.mxu0 %v1145
  %1225 = vmatpush.msra.mxu0 %v1141
  %1226 = vmatmul.f32.gmra.mxu0 %v1159
  %v1227 = vpop.f32.mrf.mxu0
  %v1228 = vadd.f32 0.0, %v1227
  %1229 = vmatmul.f32.gmra.mxu0 %v1162
  %v1230 = vpop.f32.mrf.mxu0
  %v1231 = vadd.f32 0.0, %v1230
  %1232 = vdwg.mxu0
  %1233 = vmatpush.msra.mxu0 0.0
  %1234 = vmatpush.msra.mxu0 0.0
  %1235 = vmatpush.msra.mxu0 0.0
  %1236 = vmatpush.msra.mxu0 0.0
  %1237 = vmatpush.msra.mxu0 0.0
  %1238 = vmatpush.msra.mxu0 0.0
  %1239 = vmatpush.msra.mxu0 0.0
  %1240 = vmatpush.msra.mxu0 0.0
  %1241 = vmatpush.msra.mxu0 0.0
  %1242 = vmatpush.msra.mxu0 0.0
  %1243 = vmatpush.msra.mxu0 0.0
  %1244 = vmatpush.msra.mxu0 0.0
  %1245 = vmatpush.msra.mxu0 %v1154
  %1246 = vmatpush.msra.mxu0 %v1150
  %1247 = vmatpush.msra.mxu0 %v1146
  %1248 = vmatpush.msra.mxu0 %v1142
  %1249 = vmatmul.f32.gmra.mxu0 %v1159
  %v1250 = vpop.f32.mrf.mxu0
  %v1251 = vadd.f32 0.0, %v1250
  %1252 = vmatmul.f32.gmra.mxu0 %v1162
  %v1253 = vpop.f32.mrf.mxu0
  %v1254 = vadd.f32 0.0, %v1253
  %1255 = vdwg.mxu0
  %v1256 = vadd.f32 %v1074, %v1182
  %v1257 = vadd.f32 %v1075, %v1205
  %v1258 = vadd.f32 %v1076, %v1228
  %v1259 = vadd.f32 %v1077, %v1251
  %v1260 = vadd.f32 %v1078, %v1185
  %v1261 = vadd.f32 %v1079, %v1208
  %v1262 = vadd.f32 %v1080, %v1231
  %v1263 = vadd.f32 %v1081, %v1254
  %1264 = vrot.lane.b32.xlu0 %v14, 112
  %v1265 = vpop.permute.xlu0 %1264
  %1266 = vrot.lane.b32.xlu0 %v18, 112
  %v1267 = vpop.permute.xlu0 %1266
  %1268 = vrot.lane.b32.xlu0 %v22, 112
  %v1269 = vpop.permute.xlu0 %1268
  %1270 = vrot.lane.b32.xlu0 %v26, 112
  %v1271 = vpop.permute.xlu0 %1270
  %1272 = vrot.lane.b32.xlu0 %v15, 112
  %v1273 = vpop.permute.xlu0 %1272
  %1274 = vrot.lane.b32.xlu0 %v19, 112
  %v1275 = vpop.permute.xlu0 %1274
  %1276 = vrot.lane.b32.xlu0 %v23, 112
  %v1277 = vpop.permute.xlu0 %1276
  %1278 = vrot.lane.b32.xlu0 %v27, 112
  %v1279 = vpop.permute.xlu0 %1278
  %1280 = vrot.lane.b32.xlu0 %v16, 112
  %v1281 = vpop.permute.xlu0 %1280
  %1282 = vrot.lane.b32.xlu0 %v20, 112
  %v1283 = vpop.permute.xlu0 %1282
  %1284 = vrot.lane.b32.xlu0 %v24, 112
  %v1285 = vpop.permute.xlu0 %1284
  %1286 = vrot.lane.b32.xlu0 %v28, 112
  %v1287 = vpop.permute.xlu0 %1286
  %1288 = vrot.lane.b32.xlu0 %v17, 112
  %v1289 = vpop.permute.xlu0 %1288
  %1290 = vrot.lane.b32.xlu0 %v21, 112
  %v1291 = vpop.permute.xlu0 %1290
  %1292 = vrot.lane.b32.xlu0 %v25, 112
  %v1293 = vpop.permute.xlu0 %1292
  %1294 = vrot.lane.b32.xlu0 %v29, 112
  %v1295 = vpop.permute.xlu0 %1294
  %vm1296 = vcmp.lt.s32.totalorder %v31, 112
  %v1297 = vsel %vm1296, %v1281, %v1289
  %v1298 = vsel %vm1296, %v1283, %v1291
  %v1299 = vsel %vm1296, %v1285, %v1293
  %v1300 = vsel %vm1296, %v1287, %v1295
  %v1301 = vsel %vm1296, %v1273, %v1281
  %v1302 = vsel %vm1296, %v1275, %v1283
  %v1303 = vsel %vm1296, %v1277, %v1285
  %v1304 = vsel %vm1296, %v1279, %v1287
  %v1305 = vsel %vm1296, %v1265, %v1273
  %v1306 = vsel %vm1296, %v1267, %v1275
  %v1307 = vsel %vm1296, %v1269, %v1277
  %v1308 = vsel %vm1296, %v1271, %v1279
  %v1309 = vsel %vm1296, %v1289, %v1265
  %v1310 = vsel %vm1296, %v1291, %v1267
  %v1311 = vsel %vm1296, %v1293, %v1269
  %v1312 = vsel %vm1296, %v1295, %v1271
  %v1313 = vsel %vm59, 1, 0
  %v1314 = vsel %vm60, 1, 0
  %v1315 = vsel %vm61, 1, 0
  %v1316 = vsel %vm62, 1, 0
  %vm1317 = vcmp.eq.s32.totalorder %v1313, 1
  %vm1318 = vcmp.eq.s32.totalorder %v1314, 1
  %vm1319 = vcmp.eq.s32.totalorder %v1315, 1
  %vm1320 = vcmp.eq.s32.totalorder %v1316, 1
  %v1321 = vsel %vm1317, %v1305, 0.0
  %v1322 = vsel %vm1318, %v1301, 0.0
  %v1323 = vsel %vm1319, %v1297, 0.0
  %v1324 = vsel %vm1320, %v1309, 0.0
  %v1325 = vsel %vm1317, %v1306, 0.0
  %v1326 = vsel %vm1318, %v1302, 0.0
  %v1327 = vsel %vm1319, %v1298, 0.0
  %v1328 = vsel %vm1320, %v1310, 0.0
  %v1329 = vsel %vm1317, %v1307, 0.0
  %v1330 = vsel %vm1318, %v1303, 0.0
  %v1331 = vsel %vm1319, %v1299, 0.0
  %v1332 = vsel %vm1320, %v1311, 0.0
  %v1333 = vsel %vm1317, %v1308, 0.0
  %v1334 = vsel %vm1318, %v1304, 0.0
  %v1335 = vsel %vm1319, %v1300, 0.0
  %v1336 = vsel %vm1320, %v1312, 0.0
  %s1337 = scalar_lea.vmem %s1, 112
  %v1338 = vld [vmem:[%s1337] sm:$0xff]
  %v1339 = vld [vmem:[%s1337 + $0x8] sm:$0xf]
  %v1341 = vsel %vm230, %v1338, 0
  %v1344 = vsel %vm230, %v1339, 0
  %1346 = vmatpush.msra.mxu0 0.0
  %1347 = vmatpush.msra.mxu0 0.0
  %1348 = vmatpush.msra.mxu0 0.0
  %1349 = vmatpush.msra.mxu0 0.0
  %1350 = vmatpush.msra.mxu0 0.0
  %1351 = vmatpush.msra.mxu0 0.0
  %1352 = vmatpush.msra.mxu0 0.0
  %1353 = vmatpush.msra.mxu0 0.0
  %1354 = vmatpush.msra.mxu0 0.0
  %1355 = vmatpush.msra.mxu0 0.0
  %1356 = vmatpush.msra.mxu0 0.0
  %1357 = vmatpush.msra.mxu0 0.0
  %1358 = vmatpush.msra.mxu0 %v1333
  %1359 = vmatpush.msra.mxu0 %v1329
  %1360 = vmatpush.msra.mxu0 %v1325
  %1361 = vmatpush.msra.mxu0 %v1321
  %1362 = vmatmul.f32.gmra.mxu0 %v1341
  %v1363 = vpop.f32.mrf.mxu0
  %v1364 = vadd.f32 0.0, %v1363
  %1365 = vmatmul.f32.gmra.mxu0 %v1344
  %v1366 = vpop.f32.mrf.mxu0
  %v1367 = vadd.f32 0.0, %v1366
  %1368 = vdwg.mxu0
  %1369 = vmatpush.msra.mxu0 0.0
  %1370 = vmatpush.msra.mxu0 0.0
  %1371 = vmatpush.msra.mxu0 0.0
  %1372 = vmatpush.msra.mxu0 0.0
  %1373 = vmatpush.msra.mxu0 0.0
  %1374 = vmatpush.msra.mxu0 0.0
  %1375 = vmatpush.msra.mxu0 0.0
  %1376 = vmatpush.msra.mxu0 0.0
  %1377 = vmatpush.msra.mxu0 0.0
  %1378 = vmatpush.msra.mxu0 0.0
  %1379 = vmatpush.msra.mxu0 0.0
  %1380 = vmatpush.msra.mxu0 0.0
  %1381 = vmatpush.msra.mxu0 %v1334
  %1382 = vmatpush.msra.mxu0 %v1330
  %1383 = vmatpush.msra.mxu0 %v1326
  %1384 = vmatpush.msra.mxu0 %v1322
  %1385 = vmatmul.f32.gmra.mxu0 %v1341
  %v1386 = vpop.f32.mrf.mxu0
  %v1387 = vadd.f32 0.0, %v1386
  %1388 = vmatmul.f32.gmra.mxu0 %v1344
  %v1389 = vpop.f32.mrf.mxu0
  %v1390 = vadd.f32 0.0, %v1389
  %1391 = vdwg.mxu0
  %1392 = vmatpush.msra.mxu0 0.0
  %1393 = vmatpush.msra.mxu0 0.0
  %1394 = vmatpush.msra.mxu0 0.0
  %1395 = vmatpush.msra.mxu0 0.0
  %1396 = vmatpush.msra.mxu0 0.0
  %1397 = vmatpush.msra.mxu0 0.0
  %1398 = vmatpush.msra.mxu0 0.0
  %1399 = vmatpush.msra.mxu0 0.0
  %1400 = vmatpush.msra.mxu0 0.0
  %1401 = vmatpush.msra.mxu0 0.0
  %1402 = vmatpush.msra.mxu0 0.0
  %1403 = vmatpush.msra.mxu0 0.0
  %1404 = vmatpush.msra.mxu0 %v1335
  %1405 = vmatpush.msra.mxu0 %v1331
  %1406 = vmatpush.msra.mxu0 %v1327
  %1407 = vmatpush.msra.mxu0 %v1323
  %1408 = vmatmul.f32.gmra.mxu0 %v1341
  %v1409 = vpop.f32.mrf.mxu0
  %v1410 = vadd.f32 0.0, %v1409
  %1411 = vmatmul.f32.gmra.mxu0 %v1344
  %v1412 = vpop.f32.mrf.mxu0
  %v1413 = vadd.f32 0.0, %v1412
  %1414 = vdwg.mxu0
  %1415 = vmatpush.msra.mxu0 0.0
  %1416 = vmatpush.msra.mxu0 0.0
  %1417 = vmatpush.msra.mxu0 0.0
  %1418 = vmatpush.msra.mxu0 0.0
  %1419 = vmatpush.msra.mxu0 0.0
  %1420 = vmatpush.msra.mxu0 0.0
  %1421 = vmatpush.msra.mxu0 0.0
  %1422 = vmatpush.msra.mxu0 0.0
  %1423 = vmatpush.msra.mxu0 0.0
  %1424 = vmatpush.msra.mxu0 0.0
  %1425 = vmatpush.msra.mxu0 0.0
  %1426 = vmatpush.msra.mxu0 0.0
  %1427 = vmatpush.msra.mxu0 %v1336
  %1428 = vmatpush.msra.mxu0 %v1332
  %1429 = vmatpush.msra.mxu0 %v1328
  %1430 = vmatpush.msra.mxu0 %v1324
  %1431 = vmatmul.f32.gmra.mxu0 %v1341
  %v1432 = vpop.f32.mrf.mxu0
  %v1433 = vadd.f32 0.0, %v1432
  %1434 = vmatmul.f32.gmra.mxu0 %v1344
  %v1435 = vpop.f32.mrf.mxu0
  %v1436 = vadd.f32 0.0, %v1435
  %1437 = vdwg.mxu0
  %v1438 = vadd.f32 %v1256, %v1364
  %v1439 = vadd.f32 %v1257, %v1387
  %v1440 = vadd.f32 %v1258, %v1410
  %v1441 = vadd.f32 %v1259, %v1433
  %v1442 = vadd.f32 %v1260, %v1367
  %v1443 = vadd.f32 %v1261, %v1390
  %v1444 = vadd.f32 %v1262, %v1413
  %v1445 = vadd.f32 %v1263, %v1436
  %1446 = vrot.lane.b32.xlu0 %v14, 111
  %v1447 = vpop.permute.xlu0 %1446
  %1448 = vrot.lane.b32.xlu0 %v18, 111
  %v1449 = vpop.permute.xlu0 %1448
  %1450 = vrot.lane.b32.xlu0 %v22, 111
  %v1451 = vpop.permute.xlu0 %1450
  %1452 = vrot.lane.b32.xlu0 %v26, 111
  %v1453 = vpop.permute.xlu0 %1452
  %1454 = vrot.lane.b32.xlu0 %v15, 111
  %v1455 = vpop.permute.xlu0 %1454
  %1456 = vrot.lane.b32.xlu0 %v19, 111
  %v1457 = vpop.permute.xlu0 %1456
  %1458 = vrot.lane.b32.xlu0 %v23, 111
  %v1459 = vpop.permute.xlu0 %1458
  %1460 = vrot.lane.b32.xlu0 %v27, 111
  %v1461 = vpop.permute.xlu0 %1460
  %1462 = vrot.lane.b32.xlu0 %v16, 111
  %v1463 = vpop.permute.xlu0 %1462
  %1464 = vrot.lane.b32.xlu0 %v20, 111
  %v1465 = vpop.permute.xlu0 %1464
  %1466 = vrot.lane.b32.xlu0 %v24, 111
  %v1467 = vpop.permute.xlu0 %1466
  %1468 = vrot.lane.b32.xlu0 %v28, 111
  %v1469 = vpop.permute.xlu0 %1468
  %1470 = vrot.lane.b32.xlu0 %v17, 111
  %v1471 = vpop.permute.xlu0 %1470
  %1472 = vrot.lane.b32.xlu0 %v21, 111
  %v1473 = vpop.permute.xlu0 %1472
  %1474 = vrot.lane.b32.xlu0 %v25, 111
  %v1475 = vpop.permute.xlu0 %1474
  %1476 = vrot.lane.b32.xlu0 %v29, 111
  %v1477 = vpop.permute.xlu0 %1476
  %vm1478 = vcmp.lt.s32.totalorder %v31, 111
  %v1479 = vsel %vm1478, %v1463, %v1471
  %v1480 = vsel %vm1478, %v1465, %v1473
  %v1481 = vsel %vm1478, %v1467, %v1475
  %v1482 = vsel %vm1478, %v1469, %v1477
  %v1483 = vsel %vm1478, %v1455, %v1463
  %v1484 = vsel %vm1478, %v1457, %v1465
  %v1485 = vsel %vm1478, %v1459, %v1467
  %v1486 = vsel %vm1478, %v1461, %v1469
  %v1487 = vsel %vm1478, %v1447, %v1455
  %v1488 = vsel %vm1478, %v1449, %v1457
  %v1489 = vsel %vm1478, %v1451, %v1459
  %v1490 = vsel %vm1478, %v1453, %v1461
  %v1491 = vsel %vm1478, %v1471, %v1447
  %v1492 = vsel %vm1478, %v1473, %v1449
  %v1493 = vsel %vm1478, %v1475, %v1451
  %v1494 = vsel %vm1478, %v1477, %v1453
  %v1495 = vsel %vm75, 1, 0
  %v1496 = vsel %vm76, 1, 0
  %v1497 = vsel %vm77, 1, 0
  %v1498 = vsel %vm78, 1, 0
  %vm1499 = vcmp.eq.s32.totalorder %v1495, 1
  %vm1500 = vcmp.eq.s32.totalorder %v1496, 1
  %vm1501 = vcmp.eq.s32.totalorder %v1497, 1
  %vm1502 = vcmp.eq.s32.totalorder %v1498, 1
  %v1503 = vsel %vm1499, %v1487, 0.0
  %v1504 = vsel %vm1500, %v1483, 0.0
  %v1505 = vsel %vm1501, %v1479, 0.0
  %v1506 = vsel %vm1502, %v1491, 0.0
  %v1507 = vsel %vm1499, %v1488, 0.0
  %v1508 = vsel %vm1500, %v1484, 0.0
  %v1509 = vsel %vm1501, %v1480, 0.0
  %v1510 = vsel %vm1502, %v1492, 0.0
  %v1511 = vsel %vm1499, %v1489, 0.0
  %v1512 = vsel %vm1500, %v1485, 0.0
  %v1513 = vsel %vm1501, %v1481, 0.0
  %v1514 = vsel %vm1502, %v1493, 0.0
  %v1515 = vsel %vm1499, %v1490, 0.0
  %v1516 = vsel %vm1500, %v1486, 0.0
  %v1517 = vsel %vm1501, %v1482, 0.0
  %v1518 = vsel %vm1502, %v1494, 0.0
  %s1519 = scalar_lea.vmem %s1, 128
  %v1520 = vld [vmem:[%s1519] sm:$0xff]
  %v1521 = vld [vmem:[%s1519 + $0x8] sm:$0xf]
  %v1523 = vsel %vm230, %v1520, 0
  %v1526 = vsel %vm230, %v1521, 0
  %1528 = vmatpush.msra.mxu0 0.0
  %1529 = vmatpush.msra.mxu0 0.0
  %1530 = vmatpush.msra.mxu0 0.0
  %1531 = vmatpush.msra.mxu0 0.0
  %1532 = vmatpush.msra.mxu0 0.0
  %1533 = vmatpush.msra.mxu0 0.0
  %1534 = vmatpush.msra.mxu0 0.0
  %1535 = vmatpush.msra.mxu0 0.0
  %1536 = vmatpush.msra.mxu0 0.0
  %1537 = vmatpush.msra.mxu0 0.0
  %1538 = vmatpush.msra.mxu0 0.0
  %1539 = vmatpush.msra.mxu0 0.0
  %1540 = vmatpush.msra.mxu0 %v1515
  %1541 = vmatpush.msra.mxu0 %v1511
  %1542 = vmatpush.msra.mxu0 %v1507
  %1543 = vmatpush.msra.mxu0 %v1503
  %1544 = vmatmul.f32.gmra.mxu0 %v1523
  %v1545 = vpop.f32.mrf.mxu0
  %v1546 = vadd.f32 0.0, %v1545
  %1547 = vmatmul.f32.gmra.mxu0 %v1526
  %v1548 = vpop.f32.mrf.mxu0
  %v1549 = vadd.f32 0.0, %v1548
  %1550 = vdwg.mxu0
  %1551 = vmatpush.msra.mxu0 0.0
  %1552 = vmatpush.msra.mxu0 0.0
  %1553 = vmatpush.msra.mxu0 0.0
  %1554 = vmatpush.msra.mxu0 0.0
  %1555 = vmatpush.msra.mxu0 0.0
  %1556 = vmatpush.msra.mxu0 0.0
  %1557 = vmatpush.msra.mxu0 0.0
  %1558 = vmatpush.msra.mxu0 0.0
  %1559 = vmatpush.msra.mxu0 0.0
  %1560 = vmatpush.msra.mxu0 0.0
  %1561 = vmatpush.msra.mxu0 0.0
  %1562 = vmatpush.msra.mxu0 0.0
  %1563 = vmatpush.msra.mxu0 %v1516
  %1564 = vmatpush.msra.mxu0 %v1512
  %1565 = vmatpush.msra.mxu0 %v1508
  %1566 = vmatpush.msra.mxu0 %v1504
  %1567 = vmatmul.f32.gmra.mxu0 %v1523
  %v1568 = vpop.f32.mrf.mxu0
  %v1569 = vadd.f32 0.0, %v1568
  %1570 = vmatmul.f32.gmra.mxu0 %v1526
  %v1571 = vpop.f32.mrf.mxu0
  %v1572 = vadd.f32 0.0, %v1571
  %1573 = vdwg.mxu0
  %1574 = vmatpush.msra.mxu0 0.0
  %1575 = vmatpush.msra.mxu0 0.0
  %1576 = vmatpush.msra.mxu0 0.0
  %1577 = vmatpush.msra.mxu0 0.0
  %1578 = vmatpush.msra.mxu0 0.0
  %1579 = vmatpush.msra.mxu0 0.0
  %1580 = vmatpush.msra.mxu0 0.0
  %1581 = vmatpush.msra.mxu0 0.0
  %1582 = vmatpush.msra.mxu0 0.0
  %1583 = vmatpush.msra.mxu0 0.0
  %1584 = vmatpush.msra.mxu0 0.0
  %1585 = vmatpush.msra.mxu0 0.0
  %1586 = vmatpush.msra.mxu0 %v1517
  %1587 = vmatpush.msra.mxu0 %v1513
  %1588 = vmatpush.msra.mxu0 %v1509
  %1589 = vmatpush.msra.mxu0 %v1505
  %1590 = vmatmul.f32.gmra.mxu0 %v1523
  %v1591 = vpop.f32.mrf.mxu0
  %v1592 = vadd.f32 0.0, %v1591
  %1593 = vmatmul.f32.gmra.mxu0 %v1526
  %v1594 = vpop.f32.mrf.mxu0
  %v1595 = vadd.f32 0.0, %v1594
  %1596 = vdwg.mxu0
  %1597 = vmatpush.msra.mxu0 0.0
  %1598 = vmatpush.msra.mxu0 0.0
  %1599 = vmatpush.msra.mxu0 0.0
  %1600 = vmatpush.msra.mxu0 0.0
  %1601 = vmatpush.msra.mxu0 0.0
  %1602 = vmatpush.msra.mxu0 0.0
  %1603 = vmatpush.msra.mxu0 0.0
  %1604 = vmatpush.msra.mxu0 0.0
  %1605 = vmatpush.msra.mxu0 0.0
  %1606 = vmatpush.msra.mxu0 0.0
  %1607 = vmatpush.msra.mxu0 0.0
  %1608 = vmatpush.msra.mxu0 0.0
  %1609 = vmatpush.msra.mxu0 %v1518
  %1610 = vmatpush.msra.mxu0 %v1514
  %1611 = vmatpush.msra.mxu0 %v1510
  %1612 = vmatpush.msra.mxu0 %v1506
  %1613 = vmatmul.f32.gmra.mxu0 %v1523
  %v1614 = vpop.f32.mrf.mxu0
  %v1615 = vadd.f32 0.0, %v1614
  %1616 = vmatmul.f32.gmra.mxu0 %v1526
  %v1617 = vpop.f32.mrf.mxu0
  %v1618 = vadd.f32 0.0, %v1617
  %1619 = vdwg.mxu0
  %v1620 = vadd.f32 %v1438, %v1546
  %v1621 = vadd.f32 %v1439, %v1569
  %v1622 = vadd.f32 %v1440, %v1592
  %v1623 = vadd.f32 %v1441, %v1615
  %v1624 = vadd.f32 %v1442, %v1549
  %v1625 = vadd.f32 %v1443, %v1572
  %v1626 = vadd.f32 %v1444, %v1595
  %v1627 = vadd.f32 %v1445, %v1618
  %v1628 = vld [vmem:[%s2] sm:$0xff]
  %v1629 = vld [vmem:[%s2 + $0x8] sm:$0xf]
  %1631 = vset.pattern.permute.xlu0 0
  %1632 = vperm.xlu0 %1631, %v1628
  %v1633 = vpop.permute.xlu0 %1632
  %1636 = vset.pattern.permute.xlu0 0
  %1637 = vperm.xlu0 %1636, %v1629
  %v1638 = vpop.permute.xlu0 %1637
  %v1640 = vadd.f32 %v1620, %v1633
  %v1641 = vadd.f32 %v1621, %v1633
  %v1642 = vadd.f32 %v1622, %v1633
  %v1643 = vadd.f32 %v1623, %v1633
  %v1644 = vadd.f32 %v1624, %v1638
  %v1645 = vadd.f32 %v1625, %v1638
  %v1646 = vadd.f32 %v1626, %v1638
  %v1647 = vadd.f32 %v1627, %v1638
  %v1648 = vsub.f32 0.0, %v1640
  %v1649 = vsub.f32 0.0, %v1641
  %v1650 = vsub.f32 0.0, %v1642
  %v1651 = vsub.f32 0.0, %v1643
  %v1652 = vsub.f32 0.0, %v1644
  %v1653 = vsub.f32 0.0, %v1645
  %v1654 = vsub.f32 0.0, %v1646
  %v1655 = vsub.f32 0.0, %v1647
  %v1656 = vmul.f32 %v1648, 1.442695
  %v1657 = vpow.pop %v1656
  %v1658 = vmul.f32 %v1649, 1.442695
  %v1659 = vpow.pop %v1658
  %v1660 = vmul.f32 %v1650, 1.442695
  %v1661 = vpow.pop %v1660
  %v1662 = vmul.f32 %v1651, 1.442695
  %v1663 = vpow.pop %v1662
  %v1664 = vmul.f32 %v1652, 1.442695
  %v1665 = vpow.pop %v1664
  %v1666 = vmul.f32 %v1653, 1.442695
  %v1667 = vpow.pop %v1666
  %v1668 = vmul.f32 %v1654, 1.442695
  %v1669 = vpow.pop %v1668
  %v1670 = vmul.f32 %v1655, 1.442695
  %v1671 = vpow.pop %v1670
  %v1672 = vadd.f32 %v1657, 1.0
  %v1673 = vadd.f32 %v1659, 1.0
  %v1674 = vadd.f32 %v1661, 1.0
  %v1675 = vadd.f32 %v1663, 1.0
  %v1676 = vadd.f32 %v1665, 1.0
  %v1677 = vadd.f32 %v1667, 1.0
  %v1678 = vadd.f32 %v1669, 1.0
  %v1679 = vadd.f32 %v1671, 1.0
  %v1680 = vrcp.pop %v1672
  %v1681 = vmul.f32 %v1672, %v1680
  %v1682 = vsub.f32 1.0, %v1681
  %v1683 = vmul.f32 %v1680, %v1682
  %v1684 = vadd.f32 %v1680, %v1683
  %vm1685 = vweird.f32 %v1672
  %vm1686 = vweird.f32 %v1680
  %vm1687 = vmor %vm1685, %vm1686
  %v1688 = vsel %vm1687, %v1680, %v1684
  %v1689 = vand.u32 2147483647, %v1672
  %vm1690 = vcmp.eq.f32.partialorder %v1689, 8.507059e+37
  %v1691 = vand.u32 %v1672, 2147483648
  %v1692 = vor.u32 1.1754944e-38, %v1691
  %v1693 = vsel %vm1690, %v1692, %v1688
  %v1694 = vmul.f32 1.0, %v1693
  %v1695 = vrcp.pop %v1673
  %v1696 = vmul.f32 %v1673, %v1695
  %v1697 = vsub.f32 1.0, %v1696
  %v1698 = vmul.f32 %v1695, %v1697
  %v1699 = vadd.f32 %v1695, %v1698
  %vm1700 = vweird.f32 %v1673
  %vm1701 = vweird.f32 %v1695
  %vm1702 = vmor %vm1700, %vm1701
  %v1703 = vsel %vm1702, %v1695, %v1699
  %v1704 = vand.u32 2147483647, %v1673
  %vm1705 = vcmp.eq.f32.partialorder %v1704, 8.507059e+37
  %v1706 = vand.u32 %v1673, 2147483648
  %v1707 = vor.u32 1.1754944e-38, %v1706
  %v1708 = vsel %vm1705, %v1707, %v1703
  %v1709 = vmul.f32 1.0, %v1708
  %v1710 = vrcp.pop %v1674
  %v1711 = vmul.f32 %v1674, %v1710
  %v1712 = vsub.f32 1.0, %v1711
  %v1713 = vmul.f32 %v1710, %v1712
  %v1714 = vadd.f32 %v1710, %v1713
  %vm1715 = vweird.f32 %v1674
  %vm1716 = vweird.f32 %v1710
  %vm1717 = vmor %vm1715, %vm1716
  %v1718 = vsel %vm1717, %v1710, %v1714
  %v1719 = vand.u32 2147483647, %v1674
  %vm1720 = vcmp.eq.f32.partialorder %v1719, 8.507059e+37
  %v1721 = vand.u32 %v1674, 2147483648
  %v1722 = vor.u32 1.1754944e-38, %v1721
  %v1723 = vsel %vm1720, %v1722, %v1718
  %v1724 = vmul.f32 1.0, %v1723
  %v1725 = vrcp.pop %v1675
  %v1726 = vmul.f32 %v1675, %v1725
  %v1727 = vsub.f32 1.0, %v1726
  %v1728 = vmul.f32 %v1725, %v1727
  %v1729 = vadd.f32 %v1725, %v1728
  %vm1730 = vweird.f32 %v1675
  %vm1731 = vweird.f32 %v1725
  %vm1732 = vmor %vm1730, %vm1731
  %v1733 = vsel %vm1732, %v1725, %v1729
  %v1734 = vand.u32 2147483647, %v1675
  %vm1735 = vcmp.eq.f32.partialorder %v1734, 8.507059e+37
  %v1736 = vand.u32 %v1675, 2147483648
  %v1737 = vor.u32 1.1754944e-38, %v1736
  %v1738 = vsel %vm1735, %v1737, %v1733
  %v1739 = vmul.f32 1.0, %v1738
  %v1740 = vrcp.pop %v1676
  %v1741 = vmul.f32 %v1676, %v1740
  %v1742 = vsub.f32 1.0, %v1741
  %v1743 = vmul.f32 %v1740, %v1742
  %v1744 = vadd.f32 %v1740, %v1743
  %vm1745 = vweird.f32 %v1676
  %vm1746 = vweird.f32 %v1740
  %vm1747 = vmor %vm1745, %vm1746
  %v1748 = vsel %vm1747, %v1740, %v1744
  %v1749 = vand.u32 2147483647, %v1676
  %vm1750 = vcmp.eq.f32.partialorder %v1749, 8.507059e+37
  %v1751 = vand.u32 %v1676, 2147483648
  %v1752 = vor.u32 1.1754944e-38, %v1751
  %v1753 = vsel %vm1750, %v1752, %v1748
  %v1754 = vmul.f32 1.0, %v1753
  %v1755 = vrcp.pop %v1677
  %v1756 = vmul.f32 %v1677, %v1755
  %v1757 = vsub.f32 1.0, %v1756
  %v1758 = vmul.f32 %v1755, %v1757
  %v1759 = vadd.f32 %v1755, %v1758
  %vm1760 = vweird.f32 %v1677
  %vm1761 = vweird.f32 %v1755
  %vm1762 = vmor %vm1760, %vm1761
  %v1763 = vsel %vm1762, %v1755, %v1759
  %v1764 = vand.u32 2147483647, %v1677
  %vm1765 = vcmp.eq.f32.partialorder %v1764, 8.507059e+37
  %v1766 = vand.u32 %v1677, 2147483648
  %v1767 = vor.u32 1.1754944e-38, %v1766
  %v1768 = vsel %vm1765, %v1767, %v1763
  %v1769 = vmul.f32 1.0, %v1768
  %v1770 = vrcp.pop %v1678
  %v1771 = vmul.f32 %v1678, %v1770
  %v1772 = vsub.f32 1.0, %v1771
  %v1773 = vmul.f32 %v1770, %v1772
  %v1774 = vadd.f32 %v1770, %v1773
  %vm1775 = vweird.f32 %v1678
  %vm1776 = vweird.f32 %v1770
  %vm1777 = vmor %vm1775, %vm1776
  %v1778 = vsel %vm1777, %v1770, %v1774
  %v1779 = vand.u32 2147483647, %v1678
  %vm1780 = vcmp.eq.f32.partialorder %v1779, 8.507059e+37
  %v1781 = vand.u32 %v1678, 2147483648
  %v1782 = vor.u32 1.1754944e-38, %v1781
  %v1783 = vsel %vm1780, %v1782, %v1778
  %v1784 = vmul.f32 1.0, %v1783
  %v1785 = vrcp.pop %v1679
  %v1786 = vmul.f32 %v1679, %v1785
  %v1787 = vsub.f32 1.0, %v1786
  %v1788 = vmul.f32 %v1785, %v1787
  %v1789 = vadd.f32 %v1785, %v1788
  %vm1790 = vweird.f32 %v1679
  %vm1791 = vweird.f32 %v1785
  %vm1792 = vmor %vm1790, %vm1791
  %v1793 = vsel %vm1792, %v1785, %v1789
  %v1794 = vand.u32 2147483647, %v1679
  %vm1795 = vcmp.eq.f32.partialorder %v1794, 8.507059e+37
  %v1796 = vand.u32 %v1679, 2147483648
  %v1797 = vor.u32 1.1754944e-38, %v1796
  %v1798 = vsel %vm1795, %v1797, %v1793
  %v1799 = vmul.f32 1.0, %v1798
  %v1800 = vlaneseq
  %v1801 = vshrl.u32 %v1800, 7
  %v1802 = vadd.s32 %v1801, 8
  %vm1803 = vcmp.lt.s32.totalorder %v1801, 8
  %vm1804 = vcmp.lt.s32.totalorder %v1802, 8
  %v1805 = vsel %vm1803, 1, 0
  %v1806 = vsel %vm1804, 1, 0
  %vm1807 = vcmp.eq.s32.totalorder %v1805, 1
  %vm1808 = vcmp.eq.s32.totalorder %v1806, 1
  %v1809 = vsel %vm1807, %v1694, %v1640
  %v1810 = vsel %vm1807, %v1709, %v1641
  %v1811 = vsel %vm1807, %v1724, %v1642
  %v1812 = vsel %vm1807, %v1739, %v1643
  %v1813 = vsel %vm1808, %v1754, %v1644
  %v1814 = vsel %vm1808, %v1769, %v1645
  %v1815 = vsel %vm1808, %v1784, %v1646
  %v1816 = vsel %vm1808, %v1799, %v1647
  %1817 = vst [vmem:[%s3] sm:$0xff] %v1809
  %1818 = vst [vmem:[%s3 + $0x8] sm:$0xff] %v1810
  %1819 = vst [vmem:[%s3 + $0x10] sm:$0xff] %v1811
  %1820 = vst [vmem:[%s3 + $0x18] sm:$0xff] %v1812
  %1821 = vst [vmem:[%s3 + $0x20] sm:$0xf] %v1813
  %1822 = vst [vmem:[%s3 + $0x28] sm:$0xf] %v1814
  %1823 = vst [vmem:[%s3 + $0x30] sm:$0xf] %v1815
  %1824 = vst [vmem:[%s3 + $0x38] sm:$0xf] %v1816
  // Predicated region
  $region14: #{centernet_head.1} parent=0 // pred_check
    _
  $region15: #{centernet_head.1} parent=0 // pred_check_branch
    %1826 = sbr.rel (0) target = $region17
  $region16: #{centernet_head.1} parent=0 // pred_region
    _
  $region17: #{centernet_head.1} parent=0 // pred_fallthru
    _
  // Predicated region
  $region18: #{centernet_head.1} parent=0 // pred_check
    _
  $region19: #{centernet_head.1} parent=0 // pred_check_branch
    %1828 = sbr.rel (0) target = $region21
  $region20: #{centernet_head.1} parent=0 // pred_region
    _
  $region21: #{centernet_head.1} parent=0 // pred_fallthru
    _

</llo_original>
